<compile_context>
chip_gen: v6e
topology: v6e:2x2x1
jax: 0.10.0
libtpu: 0.0.40
codegen_flags: <defaults>
</compile_context>

<pallas_src>
import functools
import math

import jax
import jax.numpy as jnp
from jax.experimental import pallas as pl
from jax.experimental.pallas import tpu as pltpu


def _mha_kernel(q_ref, k_ref, v_ref, wq_ref, wk_ref, wv_ref, wo_ref, bo_ref,
                out_ref, ctx_ref, *, hb, d_h, n_hblocks):
    """One (batch-tile, head-block) grid step.

    Grid = (batch tiles [parallel], head blocks [arbitrary]).  Each step
    projects Q/K/V for `hb` heads at once (MXU width hb*d_h), runs per-head
    attention, and stashes the bf16 contexts in a VMEM scratch.  The output
    projection is deferred to the last head block and written once (bf16,
    lane-dense padded d_out).
    """
    # Static index in the common single-head-block case (no dynamic indexing).
    hb_idx = pl.program_id(1) if n_hblocks > 1 else 0

    bb, lq, eq = q_ref.shape
    _, lk, _ = k_ref.shape
    hb_dh = hb * d_h
    d_out_p = wo_ref.shape[-1]

    # Inputs / weights are already bf16 (host-side cast) -> no in-kernel casts.
    q2 = q_ref[...].reshape(bb * lq, eq)
    k2 = k_ref[...].reshape(bb * lk, k_ref.shape[-1])
    v2 = v_ref[...].reshape(bb * lk, v_ref.shape[-1])

    wq = wq_ref[hb_idx]          # (Eq, hb*d_h) bf16, 1/sqrt(d_h) pre-folded
    wk = wk_ref[hb_idx]          # (Ek, hb*d_h)
    wv = wv_ref[hb_idx]          # (Ev, hb*d_h)

    # Head-block projections: batch*seq rows fold into MXU M, width = hb*d_h.
    q_p = jnp.dot(q2, wq, preferred_element_type=jnp.float32).reshape(bb, lq, hb_dh)
    k_p = jnp.dot(k2, wk, preferred_element_type=jnp.float32).reshape(bb, lk, hb_dh)
    v_p = jnp.dot(v2, wv, preferred_element_type=jnp.float32).reshape(bb, lk, hb_dh)

    # Per-sub-head attention (hb is a small static count -> unrolled).
    # TODO(synk): flash-style Lk tiling for long sequences (v7x 64 MiB budget).
    for j in range(hb):
        sl = slice(j * d_h, (j + 1) * d_h)
        qj = q_p[:, :, sl].astype(jnp.bfloat16)
        kj = k_p[:, :, sl].astype(jnp.bfloat16)
        vj = v_p[:, :, sl].astype(jnp.bfloat16)

        # Contract last dims directly: no explicit transpose (XLU) needed.
        s = jnp.einsum('bqd,bkd->bqk', qj, kj,
                       preferred_element_type=jnp.float32)        # (bb, lq, lk)
        s = s - jnp.max(s, axis=-1, keepdims=True)
        p = jnp.exp(s)
        p = p * pl.reciprocal(jnp.sum(p, axis=-1, keepdims=True), approx=True)

        ctx = jnp.einsum('bqk,bkd->bqd', p.astype(jnp.bfloat16), vj,
                         preferred_element_type=jnp.float32)      # (bb, lq, d_h)

        # Stash this head's context in the per-head-block scratch slab.
        ctx_ref[hb_idx, :, j * d_h:(j + 1) * d_h] = (
            ctx.reshape(bb * lq, d_h).astype(jnp.bfloat16))

    # Deferred output projection: once every head's context is in the scratch,
    # matmul against the resident wo and write the bf16 output once.
    def _finalize():
        y = jnp.dot(ctx_ref[0], wo_ref[0], preferred_element_type=jnp.float32)
        for i in range(1, n_hblocks):
            y = y + jnp.dot(ctx_ref[i], wo_ref[i],
                            preferred_element_type=jnp.float32)
        y = y + bo_ref[...]                                       # (1, d_out_p) f32
        out_ref[...] = y.reshape(bb, lq, d_out_p).astype(out_ref.dtype)

    if n_hblocks == 1:
        _finalize()
    else:
        pl.when(hb_idx == n_hblocks - 1)(_finalize)


def _pick_head_block(h, d_h, width_target=256):
    """Smallest head block whose projection width hb*d_h reaches the MXU lane
    target (256 on v6e/v7x); otherwise process all heads per step."""
    divisors = [d for d in range(1, h + 1) if h % d == 0]
    for d in divisors:
        if d * d_h >= width_target:
            return d
    return divisors[-1]


def _pack_params(params, *, h, hb, lane=128):
    """bf16-pack weights per head block, fold 1/sqrt(d_h) into wq, lane-pad wo."""
    wq, wk, wv, wo, bo = params               # all (in_features, out_features)
    d_model = wq.shape[1]
    d_h = d_model // h
    n_hb = h // hb
    hb_dh = hb * d_h
    d_out = wo.shape[1]
    d_out_p = pl.cdiv(d_out, lane) * lane

    def per_block(w):                         # (in, d_model) -> (n_hb, in, hb*d_h)
        return w.reshape(w.shape[0], n_hb, hb_dh).transpose(1, 0, 2)

    inv_scale = 1.0 / math.sqrt(d_h)          # fold 1/sqrt(d_k) into wq
    wq_b = (per_block(wq) * inv_scale).astype(jnp.bfloat16)
    wk_b = per_block(wk).astype(jnp.bfloat16)
    wv_b = per_block(wv).astype(jnp.bfloat16)

    wo_b = wo.reshape(n_hb, hb_dh, d_out)     # rows grouped per head block
    wo_b = jnp.pad(wo_b, ((0, 0), (0, 0), (0, d_out_p - d_out))).astype(jnp.bfloat16)
    bo_p = jnp.pad(bo, (0, d_out_p - d_out)).astype(jnp.float32).reshape(1, d_out_p)
    return wq_b, wk_b, wv_b, wo_b, bo_p, d_out_p


def _vmem_limit_bytes():
    """~70% of queried VMEM capacity, clamped to [32 MiB, 96 MiB] (v7x: ~45 MiB)."""
    cap = 128 * 1024 * 1024
    try:
        info = pltpu.get_tpu_info()
        cap = int(getattr(info, "vmem_capacity_bytes", cap))
    except Exception:
        pass
    return int(min(max(cap * 7 // 10, 32 * 1024 * 1024), 96 * 1024 * 1024))


def _approx_vmem_bytes(bb, lq, lk, eq, ek, ev, hb_dh, n_hb, d_out_p):
    """Rough per-grid-step VMEM footprint used to shrink bb if over budget."""
    bf2, f4, dbl = 2, 4, 2
    acts = dbl * bf2 * bb * (lq * eq + lk * ek + lk * ev)         # q/k/v blocks
    wts = dbl * bf2 * n_hb * hb_dh * (eq + ek + ev + d_out_p)     # resident weights
    outb = dbl * bf2 * bb * lq * d_out_p                          # output block
    scratch = bf2 * n_hb * bb * lq * hb_dh                        # ctx scratch
    interm = f4 * bb * (lq + 2 * lk) * hb_dh                      # f32 Q/K/V
    interm += 3 * f4 * bb * lq * lk                               # scores / probs
    interm += f4 * bb * lq * d_out_p                              # f32 y
    return acts + wts + outb + scratch + interm


def multi_headed_attention(query, key, value, params, *, h, row_target=256):
    """query/key: (B, L, d_k*h), value: (B, Lk, d_v*h).  Returns (B, L, h*d_v)."""
    wq, wk, wv, wo, bo = params
    d_model = wq.shape[1]
    assert d_model % h == 0
    d_h = d_model // h
    d_out = wo.shape[1]

    hb = _pick_head_block(h, d_h)
    n_hb = h // hb
    hb_dh = hb * d_h

    wq_b, wk_b, wv_b, wo_b, bo_p, d_out_p = _pack_params(params, h=h, hb=hb)

    B, Lq, Eq = query.shape
    _, Lk, Ek = key.shape
    Ev = value.shape[-1]
    assert key.shape[1] == value.shape[1]

    # Sublane-align Lq (padded query rows attend to real keys; rows stripped
    # afterwards).  Lk is NOT padded: zero keys would pollute the softmax.
    lq_p = pl.cdiv(Lq, 8) * 8
    if lq_p != Lq:
        query = jnp.pad(query, ((0, 0), (0, lq_p - Lq), (0, 0)))

    # Pick bb so bb*Lq ~ row_target MXU rows; shrink if over the VMEM budget
    # (v7x has only 64 MiB per TensorCore); pad B so awkward batch sizes don't
    # collapse bb to 1.
    vmem_limit = _vmem_limit_bytes()
    bb = max(1, min(B, pl.cdiv(row_target, lq_p)))
    while bb > 1 and _approx_vmem_bytes(bb, lq_p, Lk, Eq, Ek, Ev, hb_dh, n_hb,
                                        d_out_p) > 0.7 * vmem_limit:
        bb = max(1, bb // 2)
    b_p = pl.cdiv(B, bb) * bb
    if b_p != B:
        pad = ((0, b_p - B), (0, 0), (0, 0))
        query = jnp.pad(query, pad)
        key = jnp.pad(key, pad)
        value = jnp.pad(value, pad)

    # Host-side bf16 cast: halves activation DMA bytes, removes in-kernel casts.
    q_b = query.astype(jnp.bfloat16)
    k_b = key.astype(jnp.bfloat16)
    v_b = value.astype(jnp.bfloat16)

    grid = (b_p // bb, n_hb)        # (parallel batch tiles, arbitrary head blocks)
    kernel = functools.partial(_mha_kernel, hb=hb, d_h=d_h, n_hblocks=n_hb)

    out_p = pl.pallas_call(
        kernel,
        out_shape=jax.ShapeDtypeStruct((b_p, lq_p, d_out_p), jnp.bfloat16),
        grid_spec=pltpu.PrefetchScalarGridSpec(
            num_scalar_prefetch=0,
            grid=grid,
            in_specs=[
                pl.BlockSpec((bb, lq_p, Eq), lambda bi, hbi: (bi, 0, 0)),   # query
                pl.BlockSpec((bb, Lk, Ek), lambda bi, hbi: (bi, 0, 0)),     # key
                pl.BlockSpec((bb, Lk, Ev), lambda bi, hbi: (bi, 0, 0)),     # value
                # Weights / bias: full-array blocks with constant index maps
                # -> DMA'd once, resident across the whole grid.
                pl.BlockSpec((n_hb, Eq, hb_dh), lambda bi, hbi: (0, 0, 0)), # wq
                pl.BlockSpec((n_hb, Ek, hb_dh), lambda bi, hbi: (0, 0, 0)), # wk
                pl.BlockSpec((n_hb, Ev, hb_dh), lambda bi, hbi: (0, 0, 0)), # wv
                pl.BlockSpec((n_hb, hb_dh, d_out_p), lambda bi, hbi: (0, 0, 0)),  # wo
                pl.BlockSpec((1, d_out_p), lambda bi, hbi: (0, 0)),         # bias
            ],
            out_specs=pl.BlockSpec((bb, lq_p, d_out_p),
                                   lambda bi, hbi: (bi, 0, 0)),
            scratch_shapes=[pltpu.VMEM((n_hb, bb * lq_p, hb_dh), jnp.bfloat16)],
        ),
        compiler_params=pltpu.CompilerParams(
            dimension_semantics=("parallel", "arbitrary"),
            vmem_limit_bytes=vmem_limit),
    )(q_b, k_b, v_b, wq_b, wk_b, wv_b, wo_b, bo_p)

    return out_p[:B, :Lq, :d_out]               # strip batch/seq/lane padding


def reference_mha(query, key, value, params, *, h):
    """Pure-JAX f32 reference mirroring the PyTorch forward (eval, mask=None)."""
    wq, wk, wv, wo, bo = params
    B, Lq, _ = query.shape
    d_model = wq.shape[1]
    d_h = d_model // h

    Q = (query @ wq).reshape(B, Lq, h, d_h).transpose(0, 2, 1, 3)
    K = (key @ wk).reshape(B, key.shape[1], h, d_h).transpose(0, 2, 1, 3)
    V = (value @ wv).reshape(B, value.shape[1], h, d_h).transpose(0, 2, 1, 3)

    scores = jnp.einsum("bhqd,bhkd->bhqk", Q, K) / math.sqrt(d_h)
    p = jax.nn.softmax(scores, axis=-1)
    ctx = jnp.einsum("bhqk,bhkd->bhqd", p, V)
    ctx = ctx.transpose(0, 2, 1, 3).reshape(B, Lq, d_model)
    return ctx @ wo + bo


if __name__ == "__main__":
    # Module hyperparameters (d_k * h == d_model as the forward assumes).
    h, d_k, d_v = 4, 8, 8
    d_model = d_k * h            # 32
    B, L = 2, 8
    Eq = d_k * h                 # query/key embedding size
    Ev = d_v * h                 # value embedding size

    key0 = jax.random.PRNGKey(0)
    kq, kk, kv, kwq, kwk, kwv, kwo, kbo = jax.random.split(key0, 8)

    query = jax.random.normal(kq, (B, L, Eq), dtype=jnp.float32)
    key_ = jax.random.normal(kk, (B, L, Eq), dtype=jnp.float32)
    value = jax.random.normal(kv, (B, L, Ev), dtype=jnp.float32)

    # Deterministic parameter init (weights stored as (in_features, out_features)).
    scale = 1.0 / math.sqrt(Eq)
    wq = jax.random.uniform(kwq, (Eq, d_model), jnp.float32, -scale, scale)
    wk = jax.random.uniform(kwk, (Eq, d_model), jnp.float32, -scale, scale)
    wv = jax.random.uniform(kwv, (Ev, d_model), jnp.float32, -scale, scale)
    wo = jax.random.uniform(kwo, (d_model, h * d_v), jnp.float32, -scale, scale)
    bo = jax.random.uniform(kbo, (h * d_v,), jnp.float32, -scale, scale)
    params = (wq, wk, wv, wo, bo)

    out = multi_headed_attention(query, key_, value, params, h=h)
    out = jax.block_until_ready(out)

    ref = reference_mha(query, key_, value, params, h=h)
    assert out.shape == (B, L, h * d_v)
    # bf16 inputs/weights/output + approx reciprocal -> slightly loose tolerance.
    assert jnp.allclose(out.astype(jnp.float32), ref, atol=3e-2, rtol=3e-2), \
        "mismatch vs reference"

    print("KERNEL_OK")
</pallas_src>

<mosaic_0001>
module attributes {stable_mosaic.version = 11 : i64} {
  func.func @_mha_kernel(%arg0: i32, %arg1: i32, %arg2: memref<2x8x32xbf16, #tpu.memory_space<vmem>>, %arg3: memref<2x8x32xbf16, #tpu.memory_space<vmem>>, %arg4: memref<2x8x32xbf16, #tpu.memory_space<vmem>>, %arg5: memref<1x32x32xbf16, #tpu.memory_space<vmem>>, %arg6: memref<1x32x32xbf16, #tpu.memory_space<vmem>>, %arg7: memref<1x32x32xbf16, #tpu.memory_space<vmem>>, %arg8: memref<1x32x128xbf16, #tpu.memory_space<vmem>>, %arg9: memref<1x128xf32, #tpu.memory_space<vmem>>, %arg10: memref<2x8x128xbf16, #tpu.memory_space<vmem>>, %arg11: memref<1x16x32xbf16, #tpu.memory_space<vmem>>) attributes {dimension_semantics = [#tpu.dimension_semantics<parallel>, #tpu.dimension_semantics<arbitrary>], iteration_bounds = array<i64: 1, 1>, scalar_prefetch = 0 : i64, scratch_operands = 1 : i64, tpu.core_type = #tpu.core_type<tc>, window_params = [{transform_indices = @transform_0, window_bounds = array<i64: 2, 8, 32>}, {transform_indices = @transform_1, window_bounds = array<i64: 2, 8, 32>}, {transform_indices = @transform_2, window_bounds = array<i64: 2, 8, 32>}, {pipeline_mode = #tpu.pipeline_mode<synchronous>, transform_indices = @transform_3, window_bounds = array<i64: 1, 32, 32>}, {pipeline_mode = #tpu.pipeline_mode<synchronous>, transform_indices = @transform_4, window_bounds = array<i64: 1, 32, 32>}, {pipeline_mode = #tpu.pipeline_mode<synchronous>, transform_indices = @transform_5, window_bounds = array<i64: 1, 32, 32>}, {pipeline_mode = #tpu.pipeline_mode<synchronous>, transform_indices = @transform_6, window_bounds = array<i64: 1, 32, 128>}, {pipeline_mode = #tpu.pipeline_mode<synchronous>, transform_indices = @transform_7, window_bounds = array<i64: 1, 128>}, {transform_indices = @transform_8, window_bounds = array<i64: 2, 8, 128>}]} {
    %c0 = arith.constant 0 : index
    %c0_0 = arith.constant 0 : index
    %c0_1 = arith.constant 0 : index
    %0 = vector.load %arg2[%c0, %c0_0, %c0_1] : memref<2x8x32xbf16, #tpu.memory_space<vmem>>, vector<2x8x32xbf16>
    %1 = vector.shape_cast %0 : vector<2x8x32xbf16> to vector<16x32xbf16>
    %c0_2 = arith.constant 0 : index
    %c0_3 = arith.constant 0 : index
    %c0_4 = arith.constant 0 : index
    %2 = vector.load %arg3[%c0_2, %c0_3, %c0_4] : memref<2x8x32xbf16, #tpu.memory_space<vmem>>, vector<2x8x32xbf16>
    %3 = vector.shape_cast %2 : vector<2x8x32xbf16> to vector<16x32xbf16>
    %c0_5 = arith.constant 0 : index
    %c0_6 = arith.constant 0 : index
    %c0_7 = arith.constant 0 : index
    %4 = vector.load %arg4[%c0_5, %c0_6, %c0_7] : memref<2x8x32xbf16, #tpu.memory_space<vmem>>, vector<2x8x32xbf16>
    %5 = vector.shape_cast %4 : vector<2x8x32xbf16> to vector<16x32xbf16>
    %c0_8 = arith.constant 0 : index
    %c0_9 = arith.constant 0 : index
    %c0_10 = arith.constant 0 : index
    %6 = vector.load %arg5[%c0_8, %c0_9, %c0_10] : memref<1x32x32xbf16, #tpu.memory_space<vmem>>, vector<1x32x32xbf16>
    %7 = vector.shape_cast %6 : vector<1x32x32xbf16> to vector<32x32xbf16>
    %c0_11 = arith.constant 0 : index
    %c0_12 = arith.constant 0 : index
    %c0_13 = arith.constant 0 : index
    %8 = vector.load %arg6[%c0_11, %c0_12, %c0_13] : memref<1x32x32xbf16, #tpu.memory_space<vmem>>, vector<1x32x32xbf16>
    %9 = vector.shape_cast %8 : vector<1x32x32xbf16> to vector<32x32xbf16>
    %c0_14 = arith.constant 0 : index
    %c0_15 = arith.constant 0 : index
    %c0_16 = arith.constant 0 : index
    %10 = vector.load %arg7[%c0_14, %c0_15, %c0_16] : memref<1x32x32xbf16, #tpu.memory_space<vmem>>, vector<1x32x32xbf16>
    %11 = vector.shape_cast %10 : vector<1x32x32xbf16> to vector<32x32xbf16>
    %cst = arith.constant dense<0.000000e+00> : vector<16x32xf32>
    %12 = tpu.matmul %1, %7, %cst {dimension_numbers = #tpu.dot_dimension_numbers<[1], [0], [0], [1], [0, 0, 1, 1], [], []>} : vector<16x32xbf16>, vector<32x32xbf16>, vector<16x32xf32> -> vector<16x32xf32>
    %13 = vector.shape_cast %12 : vector<16x32xf32> to vector<2x8x32xf32>
    %cst_17 = arith.constant dense<0.000000e+00> : vector<16x32xf32>
    %14 = tpu.matmul %3, %9, %cst_17 {dimension_numbers = #tpu.dot_dimension_numbers<[1], [0], [0], [1], [0, 0, 1, 1], [], []>} : vector<16x32xbf16>, vector<32x32xbf16>, vector<16x32xf32> -> vector<16x32xf32>
    %15 = vector.shape_cast %14 : vector<16x32xf32> to vector<2x8x32xf32>
    %cst_18 = arith.constant dense<0.000000e+00> : vector<16x32xf32>
    %16 = tpu.matmul %5, %11, %cst_18 {dimension_numbers = #tpu.dot_dimension_numbers<[1], [0], [0], [1], [0, 0, 1, 1], [], []>} : vector<16x32xbf16>, vector<32x32xbf16>, vector<16x32xf32> -> vector<16x32xf32>
    %17 = vector.shape_cast %16 : vector<16x32xf32> to vector<2x8x32xf32>
    %18 = vector.extract_strided_slice %13 {offsets = [0, 0, 0], sizes = [2, 8, 8], strides = [1, 1, 1]} : vector<2x8x32xf32> to vector<2x8x8xf32>
    %19 = arith.truncf %18 : vector<2x8x8xf32> to vector<2x8x8xbf16>
    %20 = vector.extract_strided_slice %15 {offsets = [0, 0, 0], sizes = [2, 8, 8], strides = [1, 1, 1]} : vector<2x8x32xf32> to vector<2x8x8xf32>
    %21 = arith.truncf %20 : vector<2x8x8xf32> to vector<2x8x8xbf16>
    %22 = vector.extract_strided_slice %17 {offsets = [0, 0, 0], sizes = [2, 8, 8], strides = [1, 1, 1]} : vector<2x8x32xf32> to vector<2x8x8xf32>
    %23 = arith.truncf %22 : vector<2x8x8xf32> to vector<2x8x8xbf16>
    "tpu.trace_start"() <{level = 10 : i32, message = "bqd,bkd->bqk"}> : () -> ()
    %cst_19 = arith.constant dense<0.000000e+00> : vector<2x8x8xf32>
    %24 = tpu.matmul %19, %21, %cst_19 {dimension_numbers = #tpu.dot_dimension_numbers<[2], [2], [1], [1], [0, 0, 0, 1, 1, 1], [0], [0]>} : vector<2x8x8xbf16>, vector<2x8x8xbf16>, vector<2x8x8xf32> -> vector<2x8x8xf32>
    "tpu.trace_stop"() : () -> ()
    %cst_20 = arith.constant dense<0xFF800000> : vector<2x8xf32>
    %25 = vector.multi_reduction <maximumf>, %24, %cst_20 [2] : vector<2x8x8xf32> to vector<2x8xf32>
    %26 = vector.shape_cast %25 : vector<2x8xf32> to vector<2x8x1xf32>
    %27 = vector.broadcast %26 : vector<2x8x1xf32> to vector<2x8x8xf32>
    %28 = arith.subf %24, %27 : vector<2x8x8xf32>
    %29 = math.exp %28 : vector<2x8x8xf32>
    %cst_21 = arith.constant dense<0.000000e+00> : vector<2x8xf32>
    %30 = vector.multi_reduction <add>, %29, %cst_21 [2] : vector<2x8x8xf32> to vector<2x8xf32>
    %31 = vector.shape_cast %30 : vector<2x8xf32> to vector<2x8x1xf32>
    %32 = tpu.reciprocal %31 {approx = true} : vector<2x8x1xf32> -> vector<2x8x1xf32>
    %33 = vector.broadcast %32 : vector<2x8x1xf32> to vector<2x8x8xf32>
    %34 = arith.mulf %29, %33 : vector<2x8x8xf32>
    %35 = arith.truncf %34 : vector<2x8x8xf32> to vector<2x8x8xbf16>
    "tpu.trace_start"() <{level = 10 : i32, message = "bqk,bkd->bqd"}> : () -> ()
    %cst_22 = arith.constant dense<0.000000e+00> : vector<2x8x8xf32>
    %36 = tpu.matmul %35, %23, %cst_22 {dimension_numbers = #tpu.dot_dimension_numbers<[2], [1], [1], [2], [0, 0, 0, 1, 1, 2], [0], [0]>} : vector<2x8x8xbf16>, vector<2x8x8xbf16>, vector<2x8x8xf32> -> vector<2x8x8xf32>
    "tpu.trace_stop"() : () -> ()
    %37 = vector.shape_cast %36 : vector<2x8x8xf32> to vector<16x8xf32>
    %38 = arith.truncf %37 : vector<16x8xf32> to vector<16x8xbf16>
    %c0_23 = arith.constant 0 : index
    %c0_24 = arith.constant 0 : index
    %c0_25 = arith.constant 0 : index
    %39 = vector.load %arg11[%c0_23, %c0_24, %c0_25] : memref<1x16x32xbf16, #tpu.memory_space<vmem>>, vector<1x16x8xbf16>
    %40 = vector.shape_cast %39 : vector<1x16x8xbf16> to vector<16x8xbf16>
    %41 = vector.shape_cast %38 : vector<16x8xbf16> to vector<1x16x8xbf16>
    tpu.vector_store %arg11[%c0_23, %c0_24, %c0_25], %41 {strides = array<i32>} : memref<1x16x32xbf16, #tpu.memory_space<vmem>>, vector<1x16x8xbf16>,
    %42 = vector.extract_strided_slice %13 {offsets = [0, 0, 8], sizes = [2, 8, 8], strides = [1, 1, 1]} : vector<2x8x32xf32> to vector<2x8x8xf32>
    %43 = arith.truncf %42 : vector<2x8x8xf32> to vector<2x8x8xbf16>
    %44 = vector.extract_strided_slice %15 {offsets = [0, 0, 8], sizes = [2, 8, 8], strides = [1, 1, 1]} : vector<2x8x32xf32> to vector<2x8x8xf32>
    %45 = arith.truncf %44 : vector<2x8x8xf32> to vector<2x8x8xbf16>
    %46 = vector.extract_strided_slice %17 {offsets = [0, 0, 8], sizes = [2, 8, 8], strides = [1, 1, 1]} : vector<2x8x32xf32> to vector<2x8x8xf32>
    %47 = arith.truncf %46 : vector<2x8x8xf32> to vector<2x8x8xbf16>
    "tpu.trace_start"() <{level = 10 : i32, message = "bqd,bkd->bqk"}> : () -> ()
    %cst_26 = arith.constant dense<0.000000e+00> : vector<2x8x8xf32>
    %48 = tpu.matmul %43, %45, %cst_26 {dimension_numbers = #tpu.dot_dimension_numbers<[2], [2], [1], [1], [0, 0, 0, 1, 1, 1], [0], [0]>} : vector<2x8x8xbf16>, vector<2x8x8xbf16>, vector<2x8x8xf32> -> vector<2x8x8xf32>
    "tpu.trace_stop"() : () -> ()
    %cst_27 = arith.constant dense<0xFF800000> : vector<2x8xf32>
    %49 = vector.multi_reduction <maximumf>, %48, %cst_27 [2] : vector<2x8x8xf32> to vector<2x8xf32>
    %50 = vector.shape_cast %49 : vector<2x8xf32> to vector<2x8x1xf32>
    %51 = vector.broadcast %50 : vector<2x8x1xf32> to vector<2x8x8xf32>
    %52 = arith.subf %48, %51 : vector<2x8x8xf32>
    %53 = math.exp %52 : vector<2x8x8xf32>
    %cst_28 = arith.constant dense<0.000000e+00> : vector<2x8xf32>
    %54 = vector.multi_reduction <add>, %53, %cst_28 [2] : vector<2x8x8xf32> to vector<2x8xf32>
    %55 = vector.shape_cast %54 : vector<2x8xf32> to vector<2x8x1xf32>
    %56 = tpu.reciprocal %55 {approx = true} : vector<2x8x1xf32> -> vector<2x8x1xf32>
    %57 = vector.broadcast %56 : vector<2x8x1xf32> to vector<2x8x8xf32>
    %58 = arith.mulf %53, %57 : vector<2x8x8xf32>
    %59 = arith.truncf %58 : vector<2x8x8xf32> to vector<2x8x8xbf16>
    "tpu.trace_start"() <{level = 10 : i32, message = "bqk,bkd->bqd"}> : () -> ()
    %cst_29 = arith.constant dense<0.000000e+00> : vector<2x8x8xf32>
    %60 = tpu.matmul %59, %47, %cst_29 {dimension_numbers = #tpu.dot_dimension_numbers<[2], [1], [1], [2], [0, 0, 0, 1, 1, 2], [0], [0]>} : vector<2x8x8xbf16>, vector<2x8x8xbf16>, vector<2x8x8xf32> -> vector<2x8x8xf32>
    "tpu.trace_stop"() : () -> ()
    %61 = vector.shape_cast %60 : vector<2x8x8xf32> to vector<16x8xf32>
    %62 = arith.truncf %61 : vector<16x8xf32> to vector<16x8xbf16>
    %c0_30 = arith.constant 0 : index
    %c0_31 = arith.constant 0 : index
    %c8 = arith.constant 8 : index
    %63 = vector.load %arg11[%c0_30, %c0_31, %c8] : memref<1x16x32xbf16, #tpu.memory_space<vmem>>, vector<1x16x8xbf16>
    %64 = vector.shape_cast %63 : vector<1x16x8xbf16> to vector<16x8xbf16>
    %65 = vector.shape_cast %62 : vector<16x8xbf16> to vector<1x16x8xbf16>
    tpu.vector_store %arg11[%c0_30, %c0_31, %c8], %65 {strides = array<i32>} : memref<1x16x32xbf16, #tpu.memory_space<vmem>>, vector<1x16x8xbf16>,
    %66 = vector.extract_strided_slice %13 {offsets = [0, 0, 16], sizes = [2, 8, 8], strides = [1, 1, 1]} : vector<2x8x32xf32> to vector<2x8x8xf32>
    %67 = arith.truncf %66 : vector<2x8x8xf32> to vector<2x8x8xbf16>
    %68 = vector.extract_strided_slice %15 {offsets = [0, 0, 16], sizes = [2, 8, 8], strides = [1, 1, 1]} : vector<2x8x32xf32> to vector<2x8x8xf32>
    %69 = arith.truncf %68 : vector<2x8x8xf32> to vector<2x8x8xbf16>
    %70 = vector.extract_strided_slice %17 {offsets = [0, 0, 16], sizes = [2, 8, 8], strides = [1, 1, 1]} : vector<2x8x32xf32> to vector<2x8x8xf32>
    %71 = arith.truncf %70 : vector<2x8x8xf32> to vector<2x8x8xbf16>
    "tpu.trace_start"() <{level = 10 : i32, message = "bqd,bkd->bqk"}> : () -> ()
    %cst_32 = arith.constant dense<0.000000e+00> : vector<2x8x8xf32>
    %72 = tpu.matmul %67, %69, %cst_32 {dimension_numbers = #tpu.dot_dimension_numbers<[2], [2], [1], [1], [0, 0, 0, 1, 1, 1], [0], [0]>} : vector<2x8x8xbf16>, vector<2x8x8xbf16>, vector<2x8x8xf32> -> vector<2x8x8xf32>
    "tpu.trace_stop"() : () -> ()
    %cst_33 = arith.constant dense<0xFF800000> : vector<2x8xf32>
    %73 = vector.multi_reduction <maximumf>, %72, %cst_33 [2] : vector<2x8x8xf32> to vector<2x8xf32>
    %74 = vector.shape_cast %73 : vector<2x8xf32> to vector<2x8x1xf32>
    %75 = vector.broadcast %74 : vector<2x8x1xf32> to vector<2x8x8xf32>
    %76 = arith.subf %72, %75 : vector<2x8x8xf32>
    %77 = math.exp %76 : vector<2x8x8xf32>
    %cst_34 = arith.constant dense<0.000000e+00> : vector<2x8xf32>
    %78 = vector.multi_reduction <add>, %77, %cst_34 [2] : vector<2x8x8xf32> to vector<2x8xf32>
    %79 = vector.shape_cast %78 : vector<2x8xf32> to vector<2x8x1xf32>
    %80 = tpu.reciprocal %79 {approx = true} : vector<2x8x1xf32> -> vector<2x8x1xf32>
    %81 = vector.broadcast %80 : vector<2x8x1xf32> to vector<2x8x8xf32>
    %82 = arith.mulf %77, %81 : vector<2x8x8xf32>
    %83 = arith.truncf %82 : vector<2x8x8xf32> to vector<2x8x8xbf16>
    "tpu.trace_start"() <{level = 10 : i32, message = "bqk,bkd->bqd"}> : () -> ()
    %cst_35 = arith.constant dense<0.000000e+00> : vector<2x8x8xf32>
    %84 = tpu.matmul %83, %71, %cst_35 {dimension_numbers = #tpu.dot_dimension_numbers<[2], [1], [1], [2], [0, 0, 0, 1, 1, 2], [0], [0]>} : vector<2x8x8xbf16>, vector<2x8x8xbf16>, vector<2x8x8xf32> -> vector<2x8x8xf32>
    "tpu.trace_stop"() : () -> ()
    %85 = vector.shape_cast %84 : vector<2x8x8xf32> to vector<16x8xf32>
    %86 = arith.truncf %85 : vector<16x8xf32> to vector<16x8xbf16>
    %c0_36 = arith.constant 0 : index
    %c0_37 = arith.constant 0 : index
    %c16 = arith.constant 16 : index
    %87 = vector.load %arg11[%c0_36, %c0_37, %c16] : memref<1x16x32xbf16, #tpu.memory_space<vmem>>, vector<1x16x8xbf16>
    %88 = vector.shape_cast %87 : vector<1x16x8xbf16> to vector<16x8xbf16>
    %89 = vector.shape_cast %86 : vector<16x8xbf16> to vector<1x16x8xbf16>
    tpu.vector_store %arg11[%c0_36, %c0_37, %c16], %89 {strides = array<i32>} : memref<1x16x32xbf16, #tpu.memory_space<vmem>>, vector<1x16x8xbf16>,
    %90 = vector.extract_strided_slice %13 {offsets = [0, 0, 24], sizes = [2, 8, 8], strides = [1, 1, 1]} : vector<2x8x32xf32> to vector<2x8x8xf32>
    %91 = arith.truncf %90 : vector<2x8x8xf32> to vector<2x8x8xbf16>
    %92 = vector.extract_strided_slice %15 {offsets = [0, 0, 24], sizes = [2, 8, 8], strides = [1, 1, 1]} : vector<2x8x32xf32> to vector<2x8x8xf32>
    %93 = arith.truncf %92 : vector<2x8x8xf32> to vector<2x8x8xbf16>
    %94 = vector.extract_strided_slice %17 {offsets = [0, 0, 24], sizes = [2, 8, 8], strides = [1, 1, 1]} : vector<2x8x32xf32> to vector<2x8x8xf32>
    %95 = arith.truncf %94 : vector<2x8x8xf32> to vector<2x8x8xbf16>
    "tpu.trace_start"() <{level = 10 : i32, message = "bqd,bkd->bqk"}> : () -> ()
    %cst_38 = arith.constant dense<0.000000e+00> : vector<2x8x8xf32>
    %96 = tpu.matmul %91, %93, %cst_38 {dimension_numbers = #tpu.dot_dimension_numbers<[2], [2], [1], [1], [0, 0, 0, 1, 1, 1], [0], [0]>} : vector<2x8x8xbf16>, vector<2x8x8xbf16>, vector<2x8x8xf32> -> vector<2x8x8xf32>
    "tpu.trace_stop"() : () -> ()
    %cst_39 = arith.constant dense<0xFF800000> : vector<2x8xf32>
    %97 = vector.multi_reduction <maximumf>, %96, %cst_39 [2] : vector<2x8x8xf32> to vector<2x8xf32>
    %98 = vector.shape_cast %97 : vector<2x8xf32> to vector<2x8x1xf32>
    %99 = vector.broadcast %98 : vector<2x8x1xf32> to vector<2x8x8xf32>
    %100 = arith.subf %96, %99 : vector<2x8x8xf32>
    %101 = math.exp %100 : vector<2x8x8xf32>
    %cst_40 = arith.constant dense<0.000000e+00> : vector<2x8xf32>
    %102 = vector.multi_reduction <add>, %101, %cst_40 [2] : vector<2x8x8xf32> to vector<2x8xf32>
    %103 = vector.shape_cast %102 : vector<2x8xf32> to vector<2x8x1xf32>
    %104 = tpu.reciprocal %103 {approx = true} : vector<2x8x1xf32> -> vector<2x8x1xf32>
    %105 = vector.broadcast %104 : vector<2x8x1xf32> to vector<2x8x8xf32>
    %106 = arith.mulf %101, %105 : vector<2x8x8xf32>
    %107 = arith.truncf %106 : vector<2x8x8xf32> to vector<2x8x8xbf16>
    "tpu.trace_start"() <{level = 10 : i32, message = "bqk,bkd->bqd"}> : () -> ()
    %cst_41 = arith.constant dense<0.000000e+00> : vector<2x8x8xf32>
    %108 = tpu.matmul %107, %95, %cst_41 {dimension_numbers = #tpu.dot_dimension_numbers<[2], [1], [1], [2], [0, 0, 0, 1, 1, 2], [0], [0]>} : vector<2x8x8xbf16>, vector<2x8x8xbf16>, vector<2x8x8xf32> -> vector<2x8x8xf32>
    "tpu.trace_stop"() : () -> ()
    %109 = vector.shape_cast %108 : vector<2x8x8xf32> to vector<16x8xf32>
    %110 = arith.truncf %109 : vector<16x8xf32> to vector<16x8xbf16>
    %c0_42 = arith.constant 0 : index
    %c0_43 = arith.constant 0 : index
    %c24 = arith.constant 24 : index
    %111 = vector.load %arg11[%c0_42, %c0_43, %c24] : memref<1x16x32xbf16, #tpu.memory_space<vmem>>, vector<1x16x8xbf16>
    %112 = vector.shape_cast %111 : vector<1x16x8xbf16> to vector<16x8xbf16>
    %113 = vector.shape_cast %110 : vector<16x8xbf16> to vector<1x16x8xbf16>
    tpu.vector_store %arg11[%c0_42, %c0_43, %c24], %113 {strides = array<i32>} : memref<1x16x32xbf16, #tpu.memory_space<vmem>>, vector<1x16x8xbf16>,
    %c0_44 = arith.constant 0 : index
    %c0_45 = arith.constant 0 : index
    %c0_46 = arith.constant 0 : index
    %114 = vector.load %arg11[%c0_44, %c0_45, %c0_46] : memref<1x16x32xbf16, #tpu.memory_space<vmem>>, vector<1x16x32xbf16>
    %115 = vector.shape_cast %114 : vector<1x16x32xbf16> to vector<16x32xbf16>
    %c0_47 = arith.constant 0 : index
    %c0_48 = arith.constant 0 : index
    %c0_49 = arith.constant 0 : index
    %116 = vector.load %arg8[%c0_47, %c0_48, %c0_49] : memref<1x32x128xbf16, #tpu.memory_space<vmem>>, vector<1x32x128xbf16>
    %117 = vector.shape_cast %116 : vector<1x32x128xbf16> to vector<32x128xbf16>
    %cst_50 = arith.constant dense<0.000000e+00> : vector<16x128xf32>
    %118 = tpu.matmul %115, %117, %cst_50 {dimension_numbers = #tpu.dot_dimension_numbers<[1], [0], [0], [1], [0, 0, 1, 1], [], []>} : vector<16x32xbf16>, vector<32x128xbf16>, vector<16x128xf32> -> vector<16x128xf32>
    %c0_51 = arith.constant 0 : index
    %c0_52 = arith.constant 0 : index
    %119 = vector.load %arg9[%c0_51, %c0_52] : memref<1x128xf32, #tpu.memory_space<vmem>>, vector<1x128xf32>
    %120 = vector.broadcast %119 : vector<1x128xf32> to vector<16x128xf32>
    %121 = arith.addf %118, %120 : vector<16x128xf32>
    %122 = vector.shape_cast %121 : vector<16x128xf32> to vector<2x8x128xf32>
    %123 = arith.truncf %122 : vector<2x8x128xf32> to vector<2x8x128xbf16>
    %c0_53 = arith.constant 0 : index
    %c0_54 = arith.constant 0 : index
    %c0_55 = arith.constant 0 : index
    %124 = vector.load %arg10[%c0_53, %c0_54, %c0_55] : memref<2x8x128xbf16, #tpu.memory_space<vmem>>, vector<2x8x128xbf16>
    tpu.vector_store %arg10[%c0_53, %c0_54, %c0_55], %123 {strides = array<i32>} : memref<2x8x128xbf16, #tpu.memory_space<vmem>>, vector<2x8x128xbf16>,
    return
  }
  func.func @transform_0(%arg0: i32, %arg1: i32) -> (i32, i32, i32) {
    %c0_i32 = arith.constant 0 : i32
    %c0_i32_0 = arith.constant 0 : i32
    %c0_i32_1 = arith.constant 0 : i32
    return %arg0, %c0_i32, %c0_i32_0 : i32, i32, i32
  }
  func.func @transform_1(%arg0: i32, %arg1: i32) -> (i32, i32, i32) {
    %c0_i32 = arith.constant 0 : i32
    %c0_i32_0 = arith.constant 0 : i32
    %c0_i32_1 = arith.constant 0 : i32
    return %arg0, %c0_i32, %c0_i32_0 : i32, i32, i32
  }
  func.func @transform_2(%arg0: i32, %arg1: i32) -> (i32, i32, i32) {
    %c0_i32 = arith.constant 0 : i32
    %c0_i32_0 = arith.constant 0 : i32
    %c0_i32_1 = arith.constant 0 : i32
    return %arg0, %c0_i32, %c0_i32_0 : i32, i32, i32
  }
  func.func @transform_3(%arg0: i32, %arg1: i32) -> (i32, i32, i32) {
    %c0_i32 = arith.constant 0 : i32
    %c0_i32_0 = arith.constant 0 : i32
    %c0_i32_1 = arith.constant 0 : i32
    %c0_i32_2 = arith.constant 0 : i32
    return %c0_i32, %c0_i32_0, %c0_i32_1 : i32, i32, i32
  }
  func.func @transform_4(%arg0: i32, %arg1: i32) -> (i32, i32, i32) {
    %c0_i32 = arith.constant 0 : i32
    %c0_i32_0 = arith.constant 0 : i32
    %c0_i32_1 = arith.constant 0 : i32
    %c0_i32_2 = arith.constant 0 : i32
    return %c0_i32, %c0_i32_0, %c0_i32_1 : i32, i32, i32
  }
  func.func @transform_5(%arg0: i32, %arg1: i32) -> (i32, i32, i32) {
    %c0_i32 = arith.constant 0 : i32
    %c0_i32_0 = arith.constant 0 : i32
    %c0_i32_1 = arith.constant 0 : i32
    %c0_i32_2 = arith.constant 0 : i32
    return %c0_i32, %c0_i32_0, %c0_i32_1 : i32, i32, i32
  }
  func.func @transform_6(%arg0: i32, %arg1: i32) -> (i32, i32, i32) {
    %c0_i32 = arith.constant 0 : i32
    %c0_i32_0 = arith.constant 0 : i32
    %c0_i32_1 = arith.constant 0 : i32
    %c0_i32_2 = arith.constant 0 : i32
    return %c0_i32, %c0_i32_0, %c0_i32_1 : i32, i32, i32
  }
  func.func @transform_7(%arg0: i32, %arg1: i32) -> (i32, i32) {
    %c0_i32 = arith.constant 0 : i32
    %c0_i32_0 = arith.constant 0 : i32
    %c0_i32_1 = arith.constant 0 : i32
    return %c0_i32, %c0_i32_0 : i32, i32
  }
  func.func @transform_8(%arg0: i32, %arg1: i32) -> (i32, i32, i32) {
    %c0_i32 = arith.constant 0 : i32
    %c0_i32_0 = arith.constant 0 : i32
    %c0_i32_1 = arith.constant 0 : i32
    return %arg0, %c0_i32, %c0_i32_0 : i32, i32, i32
  }
}

</mosaic_0001>

<llo_original>
// kernel: tpu_custom_call.1
$region0: #{tpu_custom_call.1}
  #allocation0 [shape = 'u32[]', space=smem, size = 0x4, offset = 0x4, fixed_abs, tag = 'smem constant byte address 0x4 - core index']
  #allocation1 [shape = 'u32[144,128]{1,0:T(1,128)}', space=vmem, size = 0x12000, scoped, tag = 'internal scratch']
  #allocation2 [shape = 'bf16[1,16,32]{2,1,0:T(8,128)(2,1)}', space=vmem, size = 0x1000, scoped, tag = 'scratch operand']
  %s0 = inlined_call_operand.hbm [shape: bf16[2,8,32], index: 0, kind: input, shape index: {}]
  %s1 = inlined_call_operand.hbm [shape: bf16[2,8,32], index: 1, kind: input, shape index: {}]
  %s2 = inlined_call_operand.hbm [shape: bf16[2,8,32], index: 2, kind: input, shape index: {}]
  %s3 = inlined_call_operand.hbm [shape: bf16[1,32,32], index: 3, kind: input, shape index: {}]
  %s4 = inlined_call_operand.hbm [shape: bf16[1,32,32], index: 4, kind: input, shape index: {}]
  %s5 = inlined_call_operand.hbm [shape: bf16[1,32,32], index: 5, kind: input, shape index: {}]
  %s6 = inlined_call_operand.hbm [shape: bf16[1,32,128], index: 6, kind: input, shape index: {}]
  %s7 = inlined_call_operand.vmem [shape: f32[1,128], index: 7, kind: input, shape index: {}]
  %s8 = inlined_call_operand.hbm [shape: bf16[2,8,128], index: 8, kind: output, shape index: {}]
  %s9 = sld [smem:[#allocation0]]
  $region70: #{tpu_custom_call.1} parent=0
    _
  %s11 = ssub.s32 1, %s9
  %s12 = scalar_select 0, %s11, %s9
  $region1: #{tpu_custom_call.1} parent=0
    #allocation3 [shape = 'u8[4096]{0}', space=vmem, size = 0x1000, scoped, tag = 'input window, operand 0, single buffered']
    #allocation4 [shape = 's32[1]{0}', space=sflag, size = 0x4, scoped, tag = 'scoped memory for tpu_custom_call.1']
    #allocation5 [shape = 's32[1]{0}', space=sflag, size = 0x4, scoped, tag = 'scoped memory for tpu_custom_call.1']
    #allocation6 [shape = 'u8[4096]{0}', space=vmem, size = 0x1000, scoped, tag = 'input window, operand 1, single buffered']
    #allocation7 [shape = 's32[1]{0}', space=sflag, size = 0x4, scoped, tag = 'scoped memory for tpu_custom_call.1']
    #allocation8 [shape = 'u8[4096]{0}', space=vmem, size = 0x1000, scoped, tag = 'input window, operand 2, single buffered']
    #allocation9 [shape = 'u8[8192]{0}', space=vmem, size = 0x2000, scoped, tag = 'input window, operand 3, single buffered']
    #allocation10 [shape = 's32[1]{0}', space=sflag, size = 0x4, scoped, tag = 'scoped memory for tpu_custom_call.1']
    #allocation11 [shape = 'u8[8192]{0}', space=vmem, size = 0x2000, scoped, tag = 'input window, operand 4, single buffered']
    #allocation12 [shape = 'u8[8192]{0}', space=vmem, size = 0x2000, scoped, tag = 'input window, operand 5, single buffered']
    #allocation13 [shape = 's32[1]{0}', space=sflag, size = 0x4, scoped, tag = 'scoped memory for tpu_custom_call.1']
    #allocation14 [shape = 'u8[8192]{0}', space=vmem, size = 0x2000, scoped, tag = 'input window, operand 6, single buffered']
    #allocation15 [shape = 'u8[4096]{0}', space=vmem, size = 0x1000, scoped, tag = 'output window, operand 0, single buffered']
    %13 = vsyncpa [#allocation4], 0
    %14 = vsyncpa [#allocation7], 0
    %15 = vsyncpa [#allocation10], 0
    %16 = vsyncpa [#allocation13], 0
    %17 = vsyncpa [#allocation5], 0
    // Predicated region
    $region2: #{tpu_custom_call.1} parent=1 // pred_check
      _
    $region3: #{tpu_custom_call.1} parent=1 // pred_check_branch
      %19 = sbr.rel (0) target = $region5
    $region4: #{tpu_custom_call.1} parent=1 // pred_region
      %s21 = ssub.s32 128, 128
      %22 = vsyncadd [#allocation4], %s21
      %s23 = sshll.u32 [#allocation3], 4
      %s24 = int_to_ptr.vmem [resolvable:$true] %s23
      %29 = dma.hbm_to_vmem [thread:$0]  %s0, 128, %s24, [#allocation4], 64, 64, 4
    $region5: #{tpu_custom_call.1} parent=1 // pred_fallthru
      _
    // Predicated region
    $region6: #{tpu_custom_call.1} parent=1 // pred_check
      _
    $region7: #{tpu_custom_call.1} parent=1 // pred_check_branch
      %31 = sbr.rel (0) target = $region9
    $region8: #{tpu_custom_call.1} parent=1 // pred_region
      %s33 = ssub.s32 128, 128
      %34 = vsyncadd [#allocation7], %s33
      %s35 = sshll.u32 [#allocation6], 4
      %s36 = int_to_ptr.vmem [resolvable:$true] %s35
      %41 = dma.hbm_to_vmem [thread:$0]  %s1, 128, %s36, [#allocation7], 64, 64, 4
    $region9: #{tpu_custom_call.1} parent=1 // pred_fallthru
      _
    // Predicated region
    $region10: #{tpu_custom_call.1} parent=1 // pred_check
      _
    $region11: #{tpu_custom_call.1} parent=1 // pred_check_branch
      %43 = sbr.rel (0) target = $region13
    $region12: #{tpu_custom_call.1} parent=1 // pred_region
      %s45 = ssub.s32 128, 128
      %46 = vsyncadd [#allocation7], %s45
      %s47 = sshll.u32 [#allocation8], 4
      %s48 = int_to_ptr.vmem [resolvable:$true] %s47
      %53 = dma.hbm_to_vmem [thread:$0]  %s2, 128, %s48, [#allocation7], 64, 64, 4
    $region13: #{tpu_custom_call.1} parent=1 // pred_fallthru
      _
    // Predicated region
    $region14: #{tpu_custom_call.1} parent=1 // pred_check
      _
    $region15: #{tpu_custom_call.1} parent=1 // pred_check_branch
      %55 = sbr.rel (0) target = $region17
    $region16: #{tpu_custom_call.1} parent=1 // pred_region
      %s57 = ssub.s32 256, 256
      %58 = vsyncadd [#allocation10], %s57
      %s59 = sshll.u32 [#allocation9], 4
      %s60 = int_to_ptr.vmem [resolvable:$true] %s59
      %65 = dma.hbm_to_vmem [thread:$0]  %s3, 256, %s60, [#allocation10], 64, 64, 4
    $region17: #{tpu_custom_call.1} parent=1 // pred_fallthru
      _
    // Predicated region
    $region18: #{tpu_custom_call.1} parent=1 // pred_check
      _
    $region19: #{tpu_custom_call.1} parent=1 // pred_check_branch
      %67 = sbr.rel (0) target = $region21
    $region20: #{tpu_custom_call.1} parent=1 // pred_region
      %s69 = ssub.s32 256, 256
      %70 = vsyncadd [#allocation10], %s69
      %s71 = sshll.u32 [#allocation11], 4
      %s72 = int_to_ptr.vmem [resolvable:$true] %s71
      %77 = dma.hbm_to_vmem [thread:$0]  %s4, 256, %s72, [#allocation10], 64, 64, 4
    $region21: #{tpu_custom_call.1} parent=1 // pred_fallthru
      _
    // Predicated region
    $region22: #{tpu_custom_call.1} parent=1 // pred_check
      _
    $region23: #{tpu_custom_call.1} parent=1 // pred_check_branch
      %79 = sbr.rel (0) target = $region25
    $region24: #{tpu_custom_call.1} parent=1 // pred_region
      %s81 = ssub.s32 256, 256
      %82 = vsyncadd [#allocation13], %s81
      %s83 = sshll.u32 [#allocation12], 4
      %s84 = int_to_ptr.vmem [resolvable:$true] %s83
      %89 = dma.hbm_to_vmem [thread:$0]  %s5, 256, %s84, [#allocation13], 64, 64, 4
    $region25: #{tpu_custom_call.1} parent=1 // pred_fallthru
      _
    // Predicated region
    $region26: #{tpu_custom_call.1} parent=1 // pred_check
      _
    $region27: #{tpu_custom_call.1} parent=1 // pred_check_branch
      %91 = sbr.rel (0) target = $region29
    $region28: #{tpu_custom_call.1} parent=1 // pred_region
      %s93 = ssub.s32 256, 256
      %94 = vsyncadd [#allocation13], %s93
      %s95 = sshll.u32 [#allocation14], 4
      %s96 = int_to_ptr.vmem [resolvable:$true] %s95
      %101 = dma.hbm_to_vmem [thread:$0]  %s6, 256, %s96, [#allocation13], 64, 64, 4
    $region29: #{tpu_custom_call.1} parent=1 // pred_fallthru
      _
    // Predicated region
    $region30: #{tpu_custom_call.1} parent=1 // pred_check
      _
    $region31: #{tpu_custom_call.1} parent=1 // pred_check_branch
      %103 = sbr.rel (0) target = $region33
    $region32: #{tpu_custom_call.1} parent=1 // pred_region
      _
    $region33: #{tpu_custom_call.1} parent=1 // pred_fallthru
      _
    // Predicated region
    $region34: #{tpu_custom_call.1} parent=1 // pred_check
      _
    $region35: #{tpu_custom_call.1} parent=1 // pred_check_branch
      %105 = sbr.rel (0) target = $region37
    $region36: #{tpu_custom_call.1} parent=1 // pred_region
      %106 = dma.done [#allocation4], 128
    $region37: #{tpu_custom_call.1} parent=1 // pred_fallthru
      _
    // Predicated region
    $region38: #{tpu_custom_call.1} parent=1 // pred_check
      _
    $region39: #{tpu_custom_call.1} parent=1 // pred_check_branch
      %108 = sbr.rel (0) target = $region41
    $region40: #{tpu_custom_call.1} parent=1 // pred_region
      %109 = dma.done [#allocation7], 128
    $region41: #{tpu_custom_call.1} parent=1 // pred_fallthru
      _
    // Predicated region
    $region42: #{tpu_custom_call.1} parent=1 // pred_check
      _
    $region43: #{tpu_custom_call.1} parent=1 // pred_check_branch
      %111 = sbr.rel (0) target = $region45
    $region44: #{tpu_custom_call.1} parent=1 // pred_region
      %112 = dma.done [#allocation7], 128
    $region45: #{tpu_custom_call.1} parent=1 // pred_fallthru
      _
    // Predicated region
    $region46: #{tpu_custom_call.1} parent=1 // pred_check
      _
    $region47: #{tpu_custom_call.1} parent=1 // pred_check_branch
      %114 = sbr.rel (0) target = $region49
    $region48: #{tpu_custom_call.1} parent=1 // pred_region
      %115 = dma.done [#allocation10], 256
    $region49: #{tpu_custom_call.1} parent=1 // pred_fallthru
      _
    // Predicated region
    $region50: #{tpu_custom_call.1} parent=1 // pred_check
      _
    $region51: #{tpu_custom_call.1} parent=1 // pred_check_branch
      %117 = sbr.rel (0) target = $region53
    $region52: #{tpu_custom_call.1} parent=1 // pred_region
      %118 = dma.done [#allocation10], 256
    $region53: #{tpu_custom_call.1} parent=1 // pred_fallthru
      _
    // Predicated region
    $region54: #{tpu_custom_call.1} parent=1 // pred_check
      _
    $region55: #{tpu_custom_call.1} parent=1 // pred_check_branch
      %120 = sbr.rel (0) target = $region57
    $region56: #{tpu_custom_call.1} parent=1 // pred_region
      %121 = dma.done [#allocation13], 256
    $region57: #{tpu_custom_call.1} parent=1 // pred_fallthru
      _
    // Predicated region
    $region58: #{tpu_custom_call.1} parent=1 // pred_check
      _
    $region59: #{tpu_custom_call.1} parent=1 // pred_check_branch
      %123 = sbr.rel (0) target = $region61
    $region60: #{tpu_custom_call.1} parent=1 // pred_region
      %124 = dma.done [#allocation13], 256
    $region61: #{tpu_custom_call.1} parent=1 // pred_fallthru
      _
    %v126 = vld [vmem:[#allocation3] sm:$0xf]
    %v127 = vld [vmem:[#allocation3 + $0x4] sm:$0xf]
    %v128 = vld [vmem:[#allocation6] sm:$0xf]
    %v129 = vld [vmem:[#allocation6 + $0x4] sm:$0xf]
    %v130 = vld [vmem:[#allocation8] sm:$0xf]
    %v131 = vld [vmem:[#allocation8 + $0x4] sm:$0xf]
    %v132 = vld [vmem:[#allocation9] sm:$0xf]
    %v133 = vld [vmem:[#allocation9 + $0x4] sm:$0xf]
    %v134 = vld [vmem:[#allocation9 + $0x8] sm:$0xf]
    %v135 = vld [vmem:[#allocation9 + $0xc] sm:$0xf]
    %v136 = vld [vmem:[#allocation11] sm:$0xf]
    %v137 = vld [vmem:[#allocation11 + $0x4] sm:$0xf]
    %v138 = vld [vmem:[#allocation11 + $0x8] sm:$0xf]
    %v139 = vld [vmem:[#allocation11 + $0xc] sm:$0xf]
    %v140 = vld [vmem:[#allocation12] sm:$0xf]
    %v141 = vld [vmem:[#allocation12 + $0x4] sm:$0xf]
    %v142 = vld [vmem:[#allocation12 + $0x8] sm:$0xf]
    %v143 = vld [vmem:[#allocation12 + $0xc] sm:$0xf]
    %v146 = vunpack.c.l.b16 %v126
    %v147 = vunpack.c.l.b16 %v127
    %v148 = vpack.c.b16 %v147, %v146
    %v153 = vunpack.c.l.b16 %v132
    %v154 = vunpack.c.l.b16 %v133
    %v155 = vunpack.c.l.b16 %v134
    %v156 = vunpack.c.l.b16 %v135
    %v157 = vpack.c.b16 %v154, %v153
    %v158 = vpack.c.b16 %v156, %v155
    %vm161 = vcmask 261120
    %v163 = vsel %vm161, %v148, 0
    %165 = vmatprep.subr.bf16.mxu0 0
    %166 = vmatpush1.bf16.msra.mxu0 0
    %167 = vmatprep.subr.bf16.mxu0 0
    %168 = vmatpush1.bf16.msra.mxu0 0
    %169 = vmatprep.subr.bf16.mxu0 0
    %170 = vmatpush1.bf16.msra.mxu0 0
    %171 = vmatprep.subr.bf16.mxu0 0
    %172 = vmatpush1.bf16.msra.mxu0 0
    %173 = vmatprep.subr.bf16.mxu0 0
    %174 = vmatpush1.bf16.msra.mxu0 0
    %175 = vmatprep.subr.bf16.mxu0 0
    %176 = vmatpush1.bf16.msra.mxu0 0
    %177 = vmatprep.subr.bf16.mxu0 0
    %178 = vmatpush1.bf16.msra.mxu0 %v158
    %179 = vmatprep.subr.bf16.mxu0 0
    %180 = vmatpush1.bf16.msra.mxu0 %v157
    %181 = vmatprep.subr.bf16.mxu0 0
    %182 = vmatpush2.bf16.msra.mxu0 0
    %183 = vmatprep.subr.bf16.mxu0 0
    %184 = vmatpush2.bf16.msra.mxu0 0
    %185 = vmatprep.subr.bf16.mxu0 0
    %186 = vmatpush2.bf16.msra.mxu0 0
    %187 = vmatprep.subr.bf16.mxu0 0
    %188 = vmatpush2.bf16.msra.mxu0 0
    %189 = vmatprep.subr.bf16.mxu0 0
    %190 = vmatpush2.bf16.msra.mxu0 0
    %191 = vmatprep.subr.bf16.mxu0 0
    %192 = vmatpush2.bf16.msra.mxu0 0
    %193 = vmatprep.subr.bf16.mxu0 0
    %194 = vmatpush2.bf16.msra.mxu0 0
    %195 = vmatprep.subr.bf16.mxu0 0
    %196 = vmatpush2.bf16.msra.mxu0 0
    %197 = vmatprep.mubr.bf16.mxu0 0
    %198 = vmatmul.mubr.bf16.gmra.mxu0 %v163
    %v199 = vpop.f32.mrf.mxu0
    %v200 = vadd.f32 0.0, %v199
    %v201 = vpop.f32.mrf.mxu0
    %v202 = vpop.f32.mrf.mxu0
    %v203 = vadd.f32 0.0, %v202
    %v204 = vpop.f32.mrf.mxu0
    %205 = vdwg.mxu0
    %v208 = vunpack.c.l.b16 %v128
    %v209 = vunpack.c.l.b16 %v129
    %v210 = vpack.c.b16 %v209, %v208
    %v215 = vunpack.c.l.b16 %v136
    %v216 = vunpack.c.l.b16 %v137
    %v217 = vunpack.c.l.b16 %v138
    %v218 = vunpack.c.l.b16 %v139
    %v219 = vpack.c.b16 %v216, %v215
    %v220 = vpack.c.b16 %v218, %v217
    %v224 = vsel %vm161, %v210, 0
    %226 = vmatprep.subr.bf16.mxu0 0
    %227 = vmatpush1.bf16.msra.mxu0 0
    %228 = vmatprep.subr.bf16.mxu0 0
    %229 = vmatpush1.bf16.msra.mxu0 0
    %230 = vmatprep.subr.bf16.mxu0 0
    %231 = vmatpush1.bf16.msra.mxu0 0
    %232 = vmatprep.subr.bf16.mxu0 0
    %233 = vmatpush1.bf16.msra.mxu0 0
    %234 = vmatprep.subr.bf16.mxu0 0
    %235 = vmatpush1.bf16.msra.mxu0 0
    %236 = vmatprep.subr.bf16.mxu0 0
    %237 = vmatpush1.bf16.msra.mxu0 0
    %238 = vmatprep.subr.bf16.mxu0 0
    %239 = vmatpush1.bf16.msra.mxu0 %v220
    %240 = vmatprep.subr.bf16.mxu0 0
    %241 = vmatpush1.bf16.msra.mxu0 %v219
    %242 = vmatprep.subr.bf16.mxu0 0
    %243 = vmatpush2.bf16.msra.mxu0 0
    %244 = vmatprep.subr.bf16.mxu0 0
    %245 = vmatpush2.bf16.msra.mxu0 0
    %246 = vmatprep.subr.bf16.mxu0 0
    %247 = vmatpush2.bf16.msra.mxu0 0
    %248 = vmatprep.subr.bf16.mxu0 0
    %249 = vmatpush2.bf16.msra.mxu0 0
    %250 = vmatprep.subr.bf16.mxu0 0
    %251 = vmatpush2.bf16.msra.mxu0 0
    %252 = vmatprep.subr.bf16.mxu0 0
    %253 = vmatpush2.bf16.msra.mxu0 0
    %254 = vmatprep.subr.bf16.mxu0 0
    %255 = vmatpush2.bf16.msra.mxu0 0
    %256 = vmatprep.subr.bf16.mxu0 0
    %257 = vmatpush2.bf16.msra.mxu0 0
    %258 = vmatprep.mubr.bf16.mxu0 0
    %259 = vmatmul.mubr.bf16.gmra.mxu0 %v224
    %v260 = vpop.f32.mrf.mxu0
    %v261 = vadd.f32 0.0, %v260
    %v262 = vpop.f32.mrf.mxu0
    %v263 = vpop.f32.mrf.mxu0
    %v264 = vadd.f32 0.0, %v263
    %v265 = vpop.f32.mrf.mxu0
    %266 = vdwg.mxu0
    %v269 = vunpack.c.l.b16 %v130
    %v270 = vunpack.c.l.b16 %v131
    %v271 = vpack.c.b16 %v270, %v269
    %v276 = vunpack.c.l.b16 %v140
    %v277 = vunpack.c.l.b16 %v141
    %v278 = vunpack.c.l.b16 %v142
    %v279 = vunpack.c.l.b16 %v143
    %v280 = vpack.c.b16 %v277, %v276
    %v281 = vpack.c.b16 %v279, %v278
    %v285 = vsel %vm161, %v271, 0
    %287 = vmatprep.subr.bf16.mxu0 0
    %288 = vmatpush1.bf16.msra.mxu0 0
    %289 = vmatprep.subr.bf16.mxu0 0
    %290 = vmatpush1.bf16.msra.mxu0 0
    %291 = vmatprep.subr.bf16.mxu0 0
    %292 = vmatpush1.bf16.msra.mxu0 0
    %293 = vmatprep.subr.bf16.mxu0 0
    %294 = vmatpush1.bf16.msra.mxu0 0
    %295 = vmatprep.subr.bf16.mxu0 0
    %296 = vmatpush1.bf16.msra.mxu0 0
    %297 = vmatprep.subr.bf16.mxu0 0
    %298 = vmatpush1.bf16.msra.mxu0 0
    %299 = vmatprep.subr.bf16.mxu0 0
    %300 = vmatpush1.bf16.msra.mxu0 %v281
    %301 = vmatprep.subr.bf16.mxu0 0
    %302 = vmatpush1.bf16.msra.mxu0 %v280
    %303 = vmatprep.subr.bf16.mxu0 0
    %304 = vmatpush2.bf16.msra.mxu0 0
    %305 = vmatprep.subr.bf16.mxu0 0
    %306 = vmatpush2.bf16.msra.mxu0 0
    %307 = vmatprep.subr.bf16.mxu0 0
    %308 = vmatpush2.bf16.msra.mxu0 0
    %309 = vmatprep.subr.bf16.mxu0 0
    %310 = vmatpush2.bf16.msra.mxu0 0
    %311 = vmatprep.subr.bf16.mxu0 0
    %312 = vmatpush2.bf16.msra.mxu0 0
    %313 = vmatprep.subr.bf16.mxu0 0
    %314 = vmatpush2.bf16.msra.mxu0 0
    %315 = vmatprep.subr.bf16.mxu0 0
    %316 = vmatpush2.bf16.msra.mxu0 0
    %317 = vmatprep.subr.bf16.mxu0 0
    %318 = vmatpush2.bf16.msra.mxu0 0
    %319 = vmatprep.mubr.bf16.mxu0 0
    %320 = vmatmul.mubr.bf16.gmra.mxu0 %v285
    %v321 = vpop.f32.mrf.mxu0
    %v322 = vadd.f32 0.0, %v321
    %v323 = vpop.f32.mrf.mxu0
    %v324 = vpop.f32.mrf.mxu0
    %v325 = vadd.f32 0.0, %v324
    %v326 = vpop.f32.mrf.mxu0
    %327 = vdwg.mxu0
    %v328 = vpack.c.bf16 %v200, %v200
    %v329 = vpack.c.bf16 %v203, %v203
    %v330 = vpack.c.bf16 %v261, %v261
    %v331 = vpack.c.bf16 %v264, %v264
    %v332 = vpack.c.bf16 %v322, %v322
    %v333 = vpack.c.bf16 %v325, %v325
    %vm334 = vcmask 64512
    %v336 = vsel %vm334, %v328, 0
    %v339 = vsel %vm334, %v330, 0
    %341 = vmatprep.subr.bf16.mxu0 0
    %342 = vmatpush1.bf16.xpose.msra.mxu0 0
    %343 = vmatprep.subr.bf16.mxu0 0
    %344 = vmatpush1.bf16.xpose.msra.mxu0 0
    %345 = vmatprep.subr.bf16.mxu0 0
    %346 = vmatpush1.bf16.xpose.msra.mxu0 0
    %347 = vmatprep.subr.bf16.mxu0 0
    %348 = vmatpush1.bf16.xpose.msra.mxu0 0
    %349 = vmatprep.subr.bf16.mxu0 0
    %350 = vmatpush1.bf16.xpose.msra.mxu0 0
    %351 = vmatprep.subr.bf16.mxu0 0
    %352 = vmatpush1.bf16.xpose.msra.mxu0 0
    %353 = vmatprep.subr.bf16.mxu0 0
    %354 = vmatpush1.bf16.xpose.msra.mxu0 0
    %355 = vmatprep.subr.bf16.mxu0 0
    %356 = vmatpush1.bf16.xpose.msra.mxu0 %v339
    %357 = vmatprep.subr.bf16.mxu0 0
    %358 = vmatpush2.bf16.xpose.msra.mxu0 0
    %359 = vmatprep.subr.bf16.mxu0 0
    %360 = vmatpush2.bf16.xpose.msra.mxu0 0
    %361 = vmatprep.subr.bf16.mxu0 0
    %362 = vmatpush2.bf16.xpose.msra.mxu0 0
    %363 = vmatprep.subr.bf16.mxu0 0
    %364 = vmatpush2.bf16.xpose.msra.mxu0 0
    %365 = vmatprep.subr.bf16.mxu0 0
    %366 = vmatpush2.bf16.xpose.msra.mxu0 0
    %367 = vmatprep.subr.bf16.mxu0 0
    %368 = vmatpush2.bf16.xpose.msra.mxu0 0
    %369 = vmatprep.subr.bf16.mxu0 0
    %370 = vmatpush2.bf16.xpose.msra.mxu0 0
    %371 = vmatprep.subr.bf16.mxu0 0
    %372 = vmatpush2.bf16.xpose.msra.mxu0 0
    %373 = vmatprep.mubr.bf16.mxu0 0
    %374 = vmatmul.mubr.bf16.gmra.mxu0 %v336
    %v375 = vpop.f32.mrf.mxu0
    %v376 = vadd.f32 0.0, %v375
    %v377 = vpop.f32.mrf.mxu0
    %v378 = vpop.f32.mrf.mxu0
    %v379 = vpop.f32.mrf.mxu0
    %380 = vdwg.mxu0
    %v382 = vsel %vm334, %v329, 0
    %v385 = vsel %vm334, %v331, 0
    %387 = vmatprep.subr.bf16.mxu0 0
    %388 = vmatpush1.bf16.xpose.msra.mxu0 0
    %389 = vmatprep.subr.bf16.mxu0 0
    %390 = vmatpush1.bf16.xpose.msra.mxu0 0
    %391 = vmatprep.subr.bf16.mxu0 0
    %392 = vmatpush1.bf16.xpose.msra.mxu0 0
    %393 = vmatprep.subr.bf16.mxu0 0
    %394 = vmatpush1.bf16.xpose.msra.mxu0 0
    %395 = vmatprep.subr.bf16.mxu0 0
    %396 = vmatpush1.bf16.xpose.msra.mxu0 0
    %397 = vmatprep.subr.bf16.mxu0 0
    %398 = vmatpush1.bf16.xpose.msra.mxu0 0
    %399 = vmatprep.subr.bf16.mxu0 0
    %400 = vmatpush1.bf16.xpose.msra.mxu0 0
    %401 = vmatprep.subr.bf16.mxu0 0
    %402 = vmatpush1.bf16.xpose.msra.mxu0 %v385
    %403 = vmatprep.subr.bf16.mxu0 0
    %404 = vmatpush2.bf16.xpose.msra.mxu0 0
    %405 = vmatprep.subr.bf16.mxu0 0
    %406 = vmatpush2.bf16.xpose.msra.mxu0 0
    %407 = vmatprep.subr.bf16.mxu0 0
    %408 = vmatpush2.bf16.xpose.msra.mxu0 0
    %409 = vmatprep.subr.bf16.mxu0 0
    %410 = vmatpush2.bf16.xpose.msra.mxu0 0
    %411 = vmatprep.subr.bf16.mxu0 0
    %412 = vmatpush2.bf16.xpose.msra.mxu0 0
    %413 = vmatprep.subr.bf16.mxu0 0
    %414 = vmatpush2.bf16.xpose.msra.mxu0 0
    %415 = vmatprep.subr.bf16.mxu0 0
    %416 = vmatpush2.bf16.xpose.msra.mxu0 0
    %417 = vmatprep.subr.bf16.mxu0 0
    %418 = vmatpush2.bf16.xpose.msra.mxu0 0
    %419 = vmatprep.mubr.bf16.mxu0 0
    %420 = vmatmul.mubr.bf16.gmra.mxu0 %v382
    %v421 = vpop.f32.mrf.mxu0
    %v422 = vadd.f32 0.0, %v421
    %v423 = vpop.f32.mrf.mxu0
    %v424 = vpop.f32.mrf.mxu0
    %v425 = vpop.f32.mrf.mxu0
    %426 = vdwg.mxu0
    %v427 = vsel %vm334, %v376, -inf
    %428 = vmax.xlane.f32.xlu0 %v427
    %v429 = vpop.xlane.xlu0 %428
    %v430 = vsel %vm334, %v422, -inf
    %431 = vmax.xlane.f32.xlu0 %v430
    %v432 = vpop.xlane.xlu0 %431
    %v433 = vsub.f32 %v376, %v429
    %v434 = vsub.f32 %v422, %v432
    %v435 = vmul.f32 %v433, 1.442695
    %v436 = vpow.pop %v435
    %v437 = vmul.f32 %v434, 1.442695
    %v438 = vpow.pop %v437
    %v439 = vsel %vm334, %v436, 0.0
    %440 = vadd.xlane.f32.xlu0 %v439
    %v441 = vpop.xlane.xlu0 %440
    %v442 = vsel %vm334, %v438, 0.0
    %443 = vadd.xlane.f32.xlu0 %v442
    %v444 = vpop.xlane.xlu0 %443
    %v445 = vrcp.pop %v441
    %v446 = vrcp.pop %v444
    %v447 = vmul.f32 %v436, %v445
    %v448 = vmul.f32 %v438, %v446
    %v449 = vpack.c.bf16 %v447, %v447
    %v450 = vpack.c.bf16 %v448, %v448
    %v452 = vsel %vm334, %v449, 0
    %vm454 = vcmask 1043456
    %v456 = vsel %vm454, %v332, 0
    %458 = vmatprep.subr.bf16.mxu0 0
    %459 = vmatpush1.bf16.msra.mxu0 0
    %460 = vmatprep.subr.bf16.mxu0 0
    %461 = vmatpush1.bf16.msra.mxu0 0
    %462 = vmatprep.subr.bf16.mxu0 0
    %463 = vmatpush1.bf16.msra.mxu0 0
    %464 = vmatprep.subr.bf16.mxu0 0
    %465 = vmatpush1.bf16.msra.mxu0 0
    %466 = vmatprep.subr.bf16.mxu0 0
    %467 = vmatpush1.bf16.msra.mxu0 0
    %468 = vmatprep.subr.bf16.mxu0 0
    %469 = vmatpush1.bf16.msra.mxu0 0
    %470 = vmatprep.subr.bf16.mxu0 0
    %471 = vmatpush1.bf16.msra.mxu0 0
    %472 = vmatprep.subr.bf16.mxu0 0
    %473 = vmatpush1.bf16.msra.mxu0 %v456
    %474 = vmatprep.subr.bf16.mxu0 0
    %475 = vmatpush2.bf16.msra.mxu0 0
    %476 = vmatprep.subr.bf16.mxu0 0
    %477 = vmatpush2.bf16.msra.mxu0 0
    %478 = vmatprep.subr.bf16.mxu0 0
    %479 = vmatpush2.bf16.msra.mxu0 0
    %480 = vmatprep.subr.bf16.mxu0 0
    %481 = vmatpush2.bf16.msra.mxu0 0
    %482 = vmatprep.subr.bf16.mxu0 0
    %483 = vmatpush2.bf16.msra.mxu0 0
    %484 = vmatprep.subr.bf16.mxu0 0
    %485 = vmatpush2.bf16.msra.mxu0 0
    %486 = vmatprep.subr.bf16.mxu0 0
    %487 = vmatpush2.bf16.msra.mxu0 0
    %488 = vmatprep.subr.bf16.mxu0 0
    %489 = vmatpush2.bf16.msra.mxu0 0
    %490 = vmatprep.mubr.bf16.mxu0 0
    %491 = vmatmul.mubr.bf16.gmra.mxu0 %v452
    %v492 = vpop.f32.mrf.mxu0
    %v493 = vadd.f32 0.0, %v492
    %v494 = vpop.f32.mrf.mxu0
    %v495 = vpop.f32.mrf.mxu0
    %v496 = vpop.f32.mrf.mxu0
    %497 = vdwg.mxu0
    %v499 = vsel %vm334, %v450, 0
    %v502 = vsel %vm454, %v333, 0
    %504 = vmatprep.subr.bf16.mxu0 0
    %505 = vmatpush1.bf16.msra.mxu0 0
    %506 = vmatprep.subr.bf16.mxu0 0
    %507 = vmatpush1.bf16.msra.mxu0 0
    %508 = vmatprep.subr.bf16.mxu0 0
    %509 = vmatpush1.bf16.msra.mxu0 0
    %510 = vmatprep.subr.bf16.mxu0 0
    %511 = vmatpush1.bf16.msra.mxu0 0
    %512 = vmatprep.subr.bf16.mxu0 0
    %513 = vmatpush1.bf16.msra.mxu0 0
    %514 = vmatprep.subr.bf16.mxu0 0
    %515 = vmatpush1.bf16.msra.mxu0 0
    %516 = vmatprep.subr.bf16.mxu0 0
    %517 = vmatpush1.bf16.msra.mxu0 0
    %518 = vmatprep.subr.bf16.mxu0 0
    %519 = vmatpush1.bf16.msra.mxu0 %v502
    %520 = vmatprep.subr.bf16.mxu0 0
    %521 = vmatpush2.bf16.msra.mxu0 0
    %522 = vmatprep.subr.bf16.mxu0 0
    %523 = vmatpush2.bf16.msra.mxu0 0
    %524 = vmatprep.subr.bf16.mxu0 0
    %525 = vmatpush2.bf16.msra.mxu0 0
    %526 = vmatprep.subr.bf16.mxu0 0
    %527 = vmatpush2.bf16.msra.mxu0 0
    %528 = vmatprep.subr.bf16.mxu0 0
    %529 = vmatpush2.bf16.msra.mxu0 0
    %530 = vmatprep.subr.bf16.mxu0 0
    %531 = vmatpush2.bf16.msra.mxu0 0
    %532 = vmatprep.subr.bf16.mxu0 0
    %533 = vmatpush2.bf16.msra.mxu0 0
    %534 = vmatprep.subr.bf16.mxu0 0
    %535 = vmatpush2.bf16.msra.mxu0 0
    %536 = vmatprep.mubr.bf16.mxu0 0
    %537 = vmatmul.mubr.bf16.gmra.mxu0 %v499
    %v538 = vpop.f32.mrf.mxu0
    %v539 = vadd.f32 0.0, %v538
    %v540 = vpop.f32.mrf.mxu0
    %v541 = vpop.f32.mrf.mxu0
    %v542 = vpop.f32.mrf.mxu0
    %543 = vdwg.mxu0
    %v544 = vpack.c.bf16 %v539, %v493
    %v546 = vunpack.c.l.b16 %v544
    %v547 = vunpack.c.h.b16 %v544
    %v548 = vpack.c.b16 %v546, %v546
    %v549 = vpack.c.b16 %v547, %v547
    %vm552 = vcmask 60416
    %553 = vst.msk [vmem:[#allocation2] sm:$0xf] %vm552, %v548
    %554 = vst.msk [vmem:[#allocation2 + $0x4] sm:$0xf] %vm552, %v549
    %556 = vrot.lane.b32.xlu0 %v328, 120
    %v557 = vpop.permute.xlu0 %556
    %559 = vrot.lane.b32.xlu0 %v330, 120
    %v560 = vpop.permute.xlu0 %559
    %v562 = vsel %vm334, %v557, 0
    %v565 = vsel %vm334, %v560, 0
    %567 = vmatprep.subr.bf16.mxu0 0
    %568 = vmatpush1.bf16.xpose.msra.mxu0 0
    %569 = vmatprep.subr.bf16.mxu0 0
    %570 = vmatpush1.bf16.xpose.msra.mxu0 0
    %571 = vmatprep.subr.bf16.mxu0 0
    %572 = vmatpush1.bf16.xpose.msra.mxu0 0
    %573 = vmatprep.subr.bf16.mxu0 0
    %574 = vmatpush1.bf16.xpose.msra.mxu0 0
    %575 = vmatprep.subr.bf16.mxu0 0
    %576 = vmatpush1.bf16.xpose.msra.mxu0 0
    %577 = vmatprep.subr.bf16.mxu0 0
    %578 = vmatpush1.bf16.xpose.msra.mxu0 0
    %579 = vmatprep.subr.bf16.mxu0 0
    %580 = vmatpush1.bf16.xpose.msra.mxu0 0
    %581 = vmatprep.subr.bf16.mxu0 0
    %582 = vmatpush1.bf16.xpose.msra.mxu0 %v565
    %583 = vmatprep.subr.bf16.mxu0 0
    %584 = vmatpush2.bf16.xpose.msra.mxu0 0
    %585 = vmatprep.subr.bf16.mxu0 0
    %586 = vmatpush2.bf16.xpose.msra.mxu0 0
    %587 = vmatprep.subr.bf16.mxu0 0
    %588 = vmatpush2.bf16.xpose.msra.mxu0 0
    %589 = vmatprep.subr.bf16.mxu0 0
    %590 = vmatpush2.bf16.xpose.msra.mxu0 0
    %591 = vmatprep.subr.bf16.mxu0 0
    %592 = vmatpush2.bf16.xpose.msra.mxu0 0
    %593 = vmatprep.subr.bf16.mxu0 0
    %594 = vmatpush2.bf16.xpose.msra.mxu0 0
    %595 = vmatprep.subr.bf16.mxu0 0
    %596 = vmatpush2.bf16.xpose.msra.mxu0 0
    %597 = vmatprep.subr.bf16.mxu0 0
    %598 = vmatpush2.bf16.xpose.msra.mxu0 0
    %599 = vmatprep.mubr.bf16.mxu0 0
    %600 = vmatmul.mubr.bf16.gmra.mxu0 %v562
    %v601 = vpop.f32.mrf.mxu0
    %v602 = vadd.f32 0.0, %v601
    %v603 = vpop.f32.mrf.mxu0
    %v604 = vpop.f32.mrf.mxu0
    %v605 = vpop.f32.mrf.mxu0
    %606 = vdwg.mxu0
    %608 = vrot.lane.b32.xlu0 %v329, 120
    %v609 = vpop.permute.xlu0 %608
    %611 = vrot.lane.b32.xlu0 %v331, 120
    %v612 = vpop.permute.xlu0 %611
    %v614 = vsel %vm334, %v609, 0
    %v617 = vsel %vm334, %v612, 0
    %619 = vmatprep.subr.bf16.mxu0 0
    %620 = vmatpush1.bf16.xpose.msra.mxu0 0
    %621 = vmatprep.subr.bf16.mxu0 0
    %622 = vmatpush1.bf16.xpose.msra.mxu0 0
    %623 = vmatprep.subr.bf16.mxu0 0
    %624 = vmatpush1.bf16.xpose.msra.mxu0 0
    %625 = vmatprep.subr.bf16.mxu0 0
    %626 = vmatpush1.bf16.xpose.msra.mxu0 0
    %627 = vmatprep.subr.bf16.mxu0 0
    %628 = vmatpush1.bf16.xpose.msra.mxu0 0
    %629 = vmatprep.subr.bf16.mxu0 0
    %630 = vmatpush1.bf16.xpose.msra.mxu0 0
    %631 = vmatprep.subr.bf16.mxu0 0
    %632 = vmatpush1.bf16.xpose.msra.mxu0 0
    %633 = vmatprep.subr.bf16.mxu0 0
    %634 = vmatpush1.bf16.xpose.msra.mxu0 %v617
    %635 = vmatprep.subr.bf16.mxu0 0
    %636 = vmatpush2.bf16.xpose.msra.mxu0 0
    %637 = vmatprep.subr.bf16.mxu0 0
    %638 = vmatpush2.bf16.xpose.msra.mxu0 0
    %639 = vmatprep.subr.bf16.mxu0 0
    %640 = vmatpush2.bf16.xpose.msra.mxu0 0
    %641 = vmatprep.subr.bf16.mxu0 0
    %642 = vmatpush2.bf16.xpose.msra.mxu0 0
    %643 = vmatprep.subr.bf16.mxu0 0
    %644 = vmatpush2.bf16.xpose.msra.mxu0 0
    %645 = vmatprep.subr.bf16.mxu0 0
    %646 = vmatpush2.bf16.xpose.msra.mxu0 0
    %647 = vmatprep.subr.bf16.mxu0 0
    %648 = vmatpush2.bf16.xpose.msra.mxu0 0
    %649 = vmatprep.subr.bf16.mxu0 0
    %650 = vmatpush2.bf16.xpose.msra.mxu0 0
    %651 = vmatprep.mubr.bf16.mxu0 0
    %652 = vmatmul.mubr.bf16.gmra.mxu0 %v614
    %v653 = vpop.f32.mrf.mxu0
    %v654 = vadd.f32 0.0, %v653
    %v655 = vpop.f32.mrf.mxu0
    %v656 = vpop.f32.mrf.mxu0
    %v657 = vpop.f32.mrf.mxu0
    %658 = vdwg.mxu0
    %v659 = vsel %vm334, %v602, -inf
    %660 = vmax.xlane.f32.xlu0 %v659
    %v661 = vpop.xlane.xlu0 %660
    %v662 = vsel %vm334, %v654, -inf
    %663 = vmax.xlane.f32.xlu0 %v662
    %v664 = vpop.xlane.xlu0 %663
    %v665 = vsub.f32 %v602, %v661
    %v666 = vsub.f32 %v654, %v664
    %v667 = vmul.f32 %v665, 1.442695
    %v668 = vpow.pop %v667
    %v669 = vmul.f32 %v666, 1.442695
    %v670 = vpow.pop %v669
    %v671 = vsel %vm334, %v668, 0.0
    %672 = vadd.xlane.f32.xlu0 %v671
    %v673 = vpop.xlane.xlu0 %672
    %v674 = vsel %vm334, %v670, 0.0
    %675 = vadd.xlane.f32.xlu0 %v674
    %v676 = vpop.xlane.xlu0 %675
    %v677 = vrcp.pop %v673
    %v678 = vrcp.pop %v676
    %v679 = vmul.f32 %v668, %v677
    %v680 = vmul.f32 %v670, %v678
    %v681 = vpack.c.bf16 %v679, %v679
    %v682 = vpack.c.bf16 %v680, %v680
    %684 = vrot.lane.b32.xlu0 %v332, 120
    %v685 = vpop.permute.xlu0 %684
    %v687 = vsel %vm334, %v681, 0
    %v690 = vsel %vm454, %v685, 0
    %692 = vmatprep.subr.bf16.mxu0 0
    %693 = vmatpush1.bf16.msra.mxu0 0
    %694 = vmatprep.subr.bf16.mxu0 0
    %695 = vmatpush1.bf16.msra.mxu0 0
    %696 = vmatprep.subr.bf16.mxu0 0
    %697 = vmatpush1.bf16.msra.mxu0 0
    %698 = vmatprep.subr.bf16.mxu0 0
    %699 = vmatpush1.bf16.msra.mxu0 0
    %700 = vmatprep.subr.bf16.mxu0 0
    %701 = vmatpush1.bf16.msra.mxu0 0
    %702 = vmatprep.subr.bf16.mxu0 0
    %703 = vmatpush1.bf16.msra.mxu0 0
    %704 = vmatprep.subr.bf16.mxu0 0
    %705 = vmatpush1.bf16.msra.mxu0 0
    %706 = vmatprep.subr.bf16.mxu0 0
    %707 = vmatpush1.bf16.msra.mxu0 %v690
    %708 = vmatprep.subr.bf16.mxu0 0
    %709 = vmatpush2.bf16.msra.mxu0 0
    %710 = vmatprep.subr.bf16.mxu0 0
    %711 = vmatpush2.bf16.msra.mxu0 0
    %712 = vmatprep.subr.bf16.mxu0 0
    %713 = vmatpush2.bf16.msra.mxu0 0
    %714 = vmatprep.subr.bf16.mxu0 0
    %715 = vmatpush2.bf16.msra.mxu0 0
    %716 = vmatprep.subr.bf16.mxu0 0
    %717 = vmatpush2.bf16.msra.mxu0 0
    %718 = vmatprep.subr.bf16.mxu0 0
    %719 = vmatpush2.bf16.msra.mxu0 0
    %720 = vmatprep.subr.bf16.mxu0 0
    %721 = vmatpush2.bf16.msra.mxu0 0
    %722 = vmatprep.subr.bf16.mxu0 0
    %723 = vmatpush2.bf16.msra.mxu0 0
    %724 = vmatprep.mubr.bf16.mxu0 0
    %725 = vmatmul.mubr.bf16.gmra.mxu0 %v687
    %v726 = vpop.f32.mrf.mxu0
    %v727 = vadd.f32 0.0, %v726
    %v728 = vpop.f32.mrf.mxu0
    %v729 = vpop.f32.mrf.mxu0
    %v730 = vpop.f32.mrf.mxu0
    %731 = vdwg.mxu0
    %733 = vrot.lane.b32.xlu0 %v333, 120
    %v734 = vpop.permute.xlu0 %733
    %v736 = vsel %vm334, %v682, 0
    %v739 = vsel %vm454, %v734, 0
    %741 = vmatprep.subr.bf16.mxu0 0
    %742 = vmatpush1.bf16.msra.mxu0 0
    %743 = vmatprep.subr.bf16.mxu0 0
    %744 = vmatpush1.bf16.msra.mxu0 0
    %745 = vmatprep.subr.bf16.mxu0 0
    %746 = vmatpush1.bf16.msra.mxu0 0
    %747 = vmatprep.subr.bf16.mxu0 0
    %748 = vmatpush1.bf16.msra.mxu0 0
    %749 = vmatprep.subr.bf16.mxu0 0
    %750 = vmatpush1.bf16.msra.mxu0 0
    %751 = vmatprep.subr.bf16.mxu0 0
    %752 = vmatpush1.bf16.msra.mxu0 0
    %753 = vmatprep.subr.bf16.mxu0 0
    %754 = vmatpush1.bf16.msra.mxu0 0
    %755 = vmatprep.subr.bf16.mxu0 0
    %756 = vmatpush1.bf16.msra.mxu0 %v739
    %757 = vmatprep.subr.bf16.mxu0 0
    %758 = vmatpush2.bf16.msra.mxu0 0
    %759 = vmatprep.subr.bf16.mxu0 0
    %760 = vmatpush2.bf16.msra.mxu0 0
    %761 = vmatprep.subr.bf16.mxu0 0
    %762 = vmatpush2.bf16.msra.mxu0 0
    %763 = vmatprep.subr.bf16.mxu0 0
    %764 = vmatpush2.bf16.msra.mxu0 0
    %765 = vmatprep.subr.bf16.mxu0 0
    %766 = vmatpush2.bf16.msra.mxu0 0
    %767 = vmatprep.subr.bf16.mxu0 0
    %768 = vmatpush2.bf16.msra.mxu0 0
    %769 = vmatprep.subr.bf16.mxu0 0
    %770 = vmatpush2.bf16.msra.mxu0 0
    %771 = vmatprep.subr.bf16.mxu0 0
    %772 = vmatpush2.bf16.msra.mxu0 0
    %773 = vmatprep.mubr.bf16.mxu0 0
    %774 = vmatmul.mubr.bf16.gmra.mxu0 %v736
    %v775 = vpop.f32.mrf.mxu0
    %v776 = vadd.f32 0.0, %v775
    %v777 = vpop.f32.mrf.mxu0
    %v778 = vpop.f32.mrf.mxu0
    %v779 = vpop.f32.mrf.mxu0
    %780 = vdwg.mxu0
    %v781 = vpack.c.bf16 %v776, %v727
    %v783 = vunpack.c.l.b16 %v781
    %v784 = vunpack.c.h.b16 %v781
    %v785 = vpack.c.b16 %v783, %v783
    %v786 = vpack.c.b16 %v784, %v784
    %787 = vrot.lane.b32.xlu0 %v785, 8
    %v788 = vpop.permute.xlu0 %787
    %789 = vrot.lane.b32.xlu0 %v786, 8
    %v790 = vpop.permute.xlu0 %789
    %vm793 = vcmask 126016
    %794 = vst.msk [vmem:[#allocation2] sm:$0xf] %vm793, %v788
    %795 = vst.msk [vmem:[#allocation2 + $0x4] sm:$0xf] %vm793, %v790
    %796 = vrot.lane.b32.xlu0 %v328, 112
    %v797 = vpop.permute.xlu0 %796
    %798 = vrot.lane.b32.xlu0 %v330, 112
    %v799 = vpop.permute.xlu0 %798
    %v801 = vsel %vm334, %v797, 0
    %v804 = vsel %vm334, %v799, 0
    %806 = vmatprep.subr.bf16.mxu0 0
    %807 = vmatpush1.bf16.xpose.msra.mxu0 0
    %808 = vmatprep.subr.bf16.mxu0 0
    %809 = vmatpush1.bf16.xpose.msra.mxu0 0
    %810 = vmatprep.subr.bf16.mxu0 0
    %811 = vmatpush1.bf16.xpose.msra.mxu0 0
    %812 = vmatprep.subr.bf16.mxu0 0
    %813 = vmatpush1.bf16.xpose.msra.mxu0 0
    %814 = vmatprep.subr.bf16.mxu0 0
    %815 = vmatpush1.bf16.xpose.msra.mxu0 0
    %816 = vmatprep.subr.bf16.mxu0 0
    %817 = vmatpush1.bf16.xpose.msra.mxu0 0
    %818 = vmatprep.subr.bf16.mxu0 0
    %819 = vmatpush1.bf16.xpose.msra.mxu0 0
    %820 = vmatprep.subr.bf16.mxu0 0
    %821 = vmatpush1.bf16.xpose.msra.mxu0 %v804
    %822 = vmatprep.subr.bf16.mxu0 0
    %823 = vmatpush2.bf16.xpose.msra.mxu0 0
    %824 = vmatprep.subr.bf16.mxu0 0
    %825 = vmatpush2.bf16.xpose.msra.mxu0 0
    %826 = vmatprep.subr.bf16.mxu0 0
    %827 = vmatpush2.bf16.xpose.msra.mxu0 0
    %828 = vmatprep.subr.bf16.mxu0 0
    %829 = vmatpush2.bf16.xpose.msra.mxu0 0
    %830 = vmatprep.subr.bf16.mxu0 0
    %831 = vmatpush2.bf16.xpose.msra.mxu0 0
    %832 = vmatprep.subr.bf16.mxu0 0
    %833 = vmatpush2.bf16.xpose.msra.mxu0 0
    %834 = vmatprep.subr.bf16.mxu0 0
    %835 = vmatpush2.bf16.xpose.msra.mxu0 0
    %836 = vmatprep.subr.bf16.mxu0 0
    %837 = vmatpush2.bf16.xpose.msra.mxu0 0
    %838 = vmatprep.mubr.bf16.mxu0 0
    %839 = vmatmul.mubr.bf16.gmra.mxu0 %v801
    %v840 = vpop.f32.mrf.mxu0
    %v841 = vadd.f32 0.0, %v840
    %v842 = vpop.f32.mrf.mxu0
    %v843 = vpop.f32.mrf.mxu0
    %v844 = vpop.f32.mrf.mxu0
    %845 = vdwg.mxu0
    %846 = vrot.lane.b32.xlu0 %v329, 112
    %v847 = vpop.permute.xlu0 %846
    %848 = vrot.lane.b32.xlu0 %v331, 112
    %v849 = vpop.permute.xlu0 %848
    %v851 = vsel %vm334, %v847, 0
    %v854 = vsel %vm334, %v849, 0
    %856 = vmatprep.subr.bf16.mxu0 0
    %857 = vmatpush1.bf16.xpose.msra.mxu0 0
    %858 = vmatprep.subr.bf16.mxu0 0
    %859 = vmatpush1.bf16.xpose.msra.mxu0 0
    %860 = vmatprep.subr.bf16.mxu0 0
    %861 = vmatpush1.bf16.xpose.msra.mxu0 0
    %862 = vmatprep.subr.bf16.mxu0 0
    %863 = vmatpush1.bf16.xpose.msra.mxu0 0
    %864 = vmatprep.subr.bf16.mxu0 0
    %865 = vmatpush1.bf16.xpose.msra.mxu0 0
    %866 = vmatprep.subr.bf16.mxu0 0
    %867 = vmatpush1.bf16.xpose.msra.mxu0 0
    %868 = vmatprep.subr.bf16.mxu0 0
    %869 = vmatpush1.bf16.xpose.msra.mxu0 0
    %870 = vmatprep.subr.bf16.mxu0 0
    %871 = vmatpush1.bf16.xpose.msra.mxu0 %v854
    %872 = vmatprep.subr.bf16.mxu0 0
    %873 = vmatpush2.bf16.xpose.msra.mxu0 0
    %874 = vmatprep.subr.bf16.mxu0 0
    %875 = vmatpush2.bf16.xpose.msra.mxu0 0
    %876 = vmatprep.subr.bf16.mxu0 0
    %877 = vmatpush2.bf16.xpose.msra.mxu0 0
    %878 = vmatprep.subr.bf16.mxu0 0
    %879 = vmatpush2.bf16.xpose.msra.mxu0 0
    %880 = vmatprep.subr.bf16.mxu0 0
    %881 = vmatpush2.bf16.xpose.msra.mxu0 0
    %882 = vmatprep.subr.bf16.mxu0 0
    %883 = vmatpush2.bf16.xpose.msra.mxu0 0
    %884 = vmatprep.subr.bf16.mxu0 0
    %885 = vmatpush2.bf16.xpose.msra.mxu0 0
    %886 = vmatprep.subr.bf16.mxu0 0
    %887 = vmatpush2.bf16.xpose.msra.mxu0 0
    %888 = vmatprep.mubr.bf16.mxu0 0
    %889 = vmatmul.mubr.bf16.gmra.mxu0 %v851
    %v890 = vpop.f32.mrf.mxu0
    %v891 = vadd.f32 0.0, %v890
    %v892 = vpop.f32.mrf.mxu0
    %v893 = vpop.f32.mrf.mxu0
    %v894 = vpop.f32.mrf.mxu0
    %895 = vdwg.mxu0
    %v896 = vsel %vm334, %v841, -inf
    %897 = vmax.xlane.f32.xlu0 %v896
    %v898 = vpop.xlane.xlu0 %897
    %v899 = vsel %vm334, %v891, -inf
    %900 = vmax.xlane.f32.xlu0 %v899
    %v901 = vpop.xlane.xlu0 %900
    %v902 = vsub.f32 %v841, %v898
    %v903 = vsub.f32 %v891, %v901
    %v904 = vmul.f32 %v902, 1.442695
    %v905 = vpow.pop %v904
    %v906 = vmul.f32 %v903, 1.442695
    %v907 = vpow.pop %v906
    %v908 = vsel %vm334, %v905, 0.0
    %909 = vadd.xlane.f32.xlu0 %v908
    %v910 = vpop.xlane.xlu0 %909
    %v911 = vsel %vm334, %v907, 0.0
    %912 = vadd.xlane.f32.xlu0 %v911
    %v913 = vpop.xlane.xlu0 %912
    %v914 = vrcp.pop %v910
    %v915 = vrcp.pop %v913
    %v916 = vmul.f32 %v905, %v914
    %v917 = vmul.f32 %v907, %v915
    %v918 = vpack.c.bf16 %v916, %v916
    %v919 = vpack.c.bf16 %v917, %v917
    %920 = vrot.lane.b32.xlu0 %v332, 112
    %v921 = vpop.permute.xlu0 %920
    %v923 = vsel %vm334, %v918, 0
    %v926 = vsel %vm454, %v921, 0
    %928 = vmatprep.subr.bf16.mxu0 0
    %929 = vmatpush1.bf16.msra.mxu0 0
    %930 = vmatprep.subr.bf16.mxu0 0
    %931 = vmatpush1.bf16.msra.mxu0 0
    %932 = vmatprep.subr.bf16.mxu0 0
    %933 = vmatpush1.bf16.msra.mxu0 0
    %934 = vmatprep.subr.bf16.mxu0 0
    %935 = vmatpush1.bf16.msra.mxu0 0
    %936 = vmatprep.subr.bf16.mxu0 0
    %937 = vmatpush1.bf16.msra.mxu0 0
    %938 = vmatprep.subr.bf16.mxu0 0
    %939 = vmatpush1.bf16.msra.mxu0 0
    %940 = vmatprep.subr.bf16.mxu0 0
    %941 = vmatpush1.bf16.msra.mxu0 0
    %942 = vmatprep.subr.bf16.mxu0 0
    %943 = vmatpush1.bf16.msra.mxu0 %v926
    %944 = vmatprep.subr.bf16.mxu0 0
    %945 = vmatpush2.bf16.msra.mxu0 0
    %946 = vmatprep.subr.bf16.mxu0 0
    %947 = vmatpush2.bf16.msra.mxu0 0
    %948 = vmatprep.subr.bf16.mxu0 0
    %949 = vmatpush2.bf16.msra.mxu0 0
    %950 = vmatprep.subr.bf16.mxu0 0
    %951 = vmatpush2.bf16.msra.mxu0 0
    %952 = vmatprep.subr.bf16.mxu0 0
    %953 = vmatpush2.bf16.msra.mxu0 0
    %954 = vmatprep.subr.bf16.mxu0 0
    %955 = vmatpush2.bf16.msra.mxu0 0
    %956 = vmatprep.subr.bf16.mxu0 0
    %957 = vmatpush2.bf16.msra.mxu0 0
    %958 = vmatprep.subr.bf16.mxu0 0
    %959 = vmatpush2.bf16.msra.mxu0 0
    %960 = vmatprep.mubr.bf16.mxu0 0
    %961 = vmatmul.mubr.bf16.gmra.mxu0 %v923
    %v962 = vpop.f32.mrf.mxu0
    %v963 = vadd.f32 0.0, %v962
    %v964 = vpop.f32.mrf.mxu0
    %v965 = vpop.f32.mrf.mxu0
    %v966 = vpop.f32.mrf.mxu0
    %967 = vdwg.mxu0
    %968 = vrot.lane.b32.xlu0 %v333, 112
    %v969 = vpop.permute.xlu0 %968
    %v971 = vsel %vm334, %v919, 0
    %v974 = vsel %vm454, %v969, 0
    %976 = vmatprep.subr.bf16.mxu0 0
    %977 = vmatpush1.bf16.msra.mxu0 0
    %978 = vmatprep.subr.bf16.mxu0 0
    %979 = vmatpush1.bf16.msra.mxu0 0
    %980 = vmatprep.subr.bf16.mxu0 0
    %981 = vmatpush1.bf16.msra.mxu0 0
    %982 = vmatprep.subr.bf16.mxu0 0
    %983 = vmatpush1.bf16.msra.mxu0 0
    %984 = vmatprep.subr.bf16.mxu0 0
    %985 = vmatpush1.bf16.msra.mxu0 0
    %986 = vmatprep.subr.bf16.mxu0 0
    %987 = vmatpush1.bf16.msra.mxu0 0
    %988 = vmatprep.subr.bf16.mxu0 0
    %989 = vmatpush1.bf16.msra.mxu0 0
    %990 = vmatprep.subr.bf16.mxu0 0
    %991 = vmatpush1.bf16.msra.mxu0 %v974
    %992 = vmatprep.subr.bf16.mxu0 0
    %993 = vmatpush2.bf16.msra.mxu0 0
    %994 = vmatprep.subr.bf16.mxu0 0
    %995 = vmatpush2.bf16.msra.mxu0 0
    %996 = vmatprep.subr.bf16.mxu0 0
    %997 = vmatpush2.bf16.msra.mxu0 0
    %998 = vmatprep.subr.bf16.mxu0 0
    %999 = vmatpush2.bf16.msra.mxu0 0
    %1000 = vmatprep.subr.bf16.mxu0 0
    %1001 = vmatpush2.bf16.msra.mxu0 0
    %1002 = vmatprep.subr.bf16.mxu0 0
    %1003 = vmatpush2.bf16.msra.mxu0 0
    %1004 = vmatprep.subr.bf16.mxu0 0
    %1005 = vmatpush2.bf16.msra.mxu0 0
    %1006 = vmatprep.subr.bf16.mxu0 0
    %1007 = vmatpush2.bf16.msra.mxu0 0
    %1008 = vmatprep.mubr.bf16.mxu0 0
    %1009 = vmatmul.mubr.bf16.gmra.mxu0 %v971
    %v1010 = vpop.f32.mrf.mxu0
    %v1011 = vadd.f32 0.0, %v1010
    %v1012 = vpop.f32.mrf.mxu0
    %v1013 = vpop.f32.mrf.mxu0
    %v1014 = vpop.f32.mrf.mxu0
    %1015 = vdwg.mxu0
    %v1016 = vpack.c.bf16 %v1011, %v963
    %v1018 = vunpack.c.l.b16 %v1016
    %v1019 = vunpack.c.h.b16 %v1016
    %v1020 = vpack.c.b16 %v1018, %v1018
    %v1021 = vpack.c.b16 %v1019, %v1019
    %1022 = vrot.lane.b32.xlu0 %v1020, 16
    %v1023 = vpop.permute.xlu0 %1022
    %1024 = vrot.lane.b32.xlu0 %v1021, 16
    %v1025 = vpop.permute.xlu0 %1024
    %vm1028 = vcmask 191616
    %1029 = vst.msk [vmem:[#allocation2] sm:$0xf] %vm1028, %v1023
    %1030 = vst.msk [vmem:[#allocation2 + $0x4] sm:$0xf] %vm1028, %v1025
    %1031 = vrot.lane.b32.xlu0 %v328, 104
    %v1032 = vpop.permute.xlu0 %1031
    %1033 = vrot.lane.b32.xlu0 %v330, 104
    %v1034 = vpop.permute.xlu0 %1033
    %v1036 = vsel %vm334, %v1032, 0
    %v1039 = vsel %vm334, %v1034, 0
    %1041 = vmatprep.subr.bf16.mxu0 0
    %1042 = vmatpush1.bf16.xpose.msra.mxu0 0
    %1043 = vmatprep.subr.bf16.mxu0 0
    %1044 = vmatpush1.bf16.xpose.msra.mxu0 0
    %1045 = vmatprep.subr.bf16.mxu0 0
    %1046 = vmatpush1.bf16.xpose.msra.mxu0 0
    %1047 = vmatprep.subr.bf16.mxu0 0
    %1048 = vmatpush1.bf16.xpose.msra.mxu0 0
    %1049 = vmatprep.subr.bf16.mxu0 0
    %1050 = vmatpush1.bf16.xpose.msra.mxu0 0
    %1051 = vmatprep.subr.bf16.mxu0 0
    %1052 = vmatpush1.bf16.xpose.msra.mxu0 0
    %1053 = vmatprep.subr.bf16.mxu0 0
    %1054 = vmatpush1.bf16.xpose.msra.mxu0 0
    %1055 = vmatprep.subr.bf16.mxu0 0
    %1056 = vmatpush1.bf16.xpose.msra.mxu0 %v1039
    %1057 = vmatprep.subr.bf16.mxu0 0
    %1058 = vmatpush2.bf16.xpose.msra.mxu0 0
    %1059 = vmatprep.subr.bf16.mxu0 0
    %1060 = vmatpush2.bf16.xpose.msra.mxu0 0
    %1061 = vmatprep.subr.bf16.mxu0 0
    %1062 = vmatpush2.bf16.xpose.msra.mxu0 0
    %1063 = vmatprep.subr.bf16.mxu0 0
    %1064 = vmatpush2.bf16.xpose.msra.mxu0 0
    %1065 = vmatprep.subr.bf16.mxu0 0
    %1066 = vmatpush2.bf16.xpose.msra.mxu0 0
    %1067 = vmatprep.subr.bf16.mxu0 0
    %1068 = vmatpush2.bf16.xpose.msra.mxu0 0
    %1069 = vmatprep.subr.bf16.mxu0 0
    %1070 = vmatpush2.bf16.xpose.msra.mxu0 0
    %1071 = vmatprep.subr.bf16.mxu0 0
    %1072 = vmatpush2.bf16.xpose.msra.mxu0 0
    %1073 = vmatprep.mubr.bf16.mxu0 0
    %1074 = vmatmul.mubr.bf16.gmra.mxu0 %v1036
    %v1075 = vpop.f32.mrf.mxu0
    %v1076 = vadd.f32 0.0, %v1075
    %v1077 = vpop.f32.mrf.mxu0
    %v1078 = vpop.f32.mrf.mxu0
    %v1079 = vpop.f32.mrf.mxu0
    %1080 = vdwg.mxu0
    %1081 = vrot.lane.b32.xlu0 %v329, 104
    %v1082 = vpop.permute.xlu0 %1081
    %1083 = vrot.lane.b32.xlu0 %v331, 104
    %v1084 = vpop.permute.xlu0 %1083
    %v1086 = vsel %vm334, %v1082, 0
    %v1089 = vsel %vm334, %v1084, 0
    %1091 = vmatprep.subr.bf16.mxu0 0
    %1092 = vmatpush1.bf16.xpose.msra.mxu0 0
    %1093 = vmatprep.subr.bf16.mxu0 0
    %1094 = vmatpush1.bf16.xpose.msra.mxu0 0
    %1095 = vmatprep.subr.bf16.mxu0 0
    %1096 = vmatpush1.bf16.xpose.msra.mxu0 0
    %1097 = vmatprep.subr.bf16.mxu0 0
    %1098 = vmatpush1.bf16.xpose.msra.mxu0 0
    %1099 = vmatprep.subr.bf16.mxu0 0
    %1100 = vmatpush1.bf16.xpose.msra.mxu0 0
    %1101 = vmatprep.subr.bf16.mxu0 0
    %1102 = vmatpush1.bf16.xpose.msra.mxu0 0
    %1103 = vmatprep.subr.bf16.mxu0 0
    %1104 = vmatpush1.bf16.xpose.msra.mxu0 0
    %1105 = vmatprep.subr.bf16.mxu0 0
    %1106 = vmatpush1.bf16.xpose.msra.mxu0 %v1089
    %1107 = vmatprep.subr.bf16.mxu0 0
    %1108 = vmatpush2.bf16.xpose.msra.mxu0 0
    %1109 = vmatprep.subr.bf16.mxu0 0
    %1110 = vmatpush2.bf16.xpose.msra.mxu0 0
    %1111 = vmatprep.subr.bf16.mxu0 0
    %1112 = vmatpush2.bf16.xpose.msra.mxu0 0
    %1113 = vmatprep.subr.bf16.mxu0 0
    %1114 = vmatpush2.bf16.xpose.msra.mxu0 0
    %1115 = vmatprep.subr.bf16.mxu0 0
    %1116 = vmatpush2.bf16.xpose.msra.mxu0 0
    %1117 = vmatprep.subr.bf16.mxu0 0
    %1118 = vmatpush2.bf16.xpose.msra.mxu0 0
    %1119 = vmatprep.subr.bf16.mxu0 0
    %1120 = vmatpush2.bf16.xpose.msra.mxu0 0
    %1121 = vmatprep.subr.bf16.mxu0 0
    %1122 = vmatpush2.bf16.xpose.msra.mxu0 0
    %1123 = vmatprep.mubr.bf16.mxu0 0
    %1124 = vmatmul.mubr.bf16.gmra.mxu0 %v1086
    %v1125 = vpop.f32.mrf.mxu0
    %v1126 = vadd.f32 0.0, %v1125
    %v1127 = vpop.f32.mrf.mxu0
    %v1128 = vpop.f32.mrf.mxu0
    %v1129 = vpop.f32.mrf.mxu0
    %1130 = vdwg.mxu0
    %v1131 = vsel %vm334, %v1076, -inf
    %1132 = vmax.xlane.f32.xlu0 %v1131
    %v1133 = vpop.xlane.xlu0 %1132
    %v1134 = vsel %vm334, %v1126, -inf
    %1135 = vmax.xlane.f32.xlu0 %v1134
    %v1136 = vpop.xlane.xlu0 %1135
    %v1137 = vsub.f32 %v1076, %v1133
    %v1138 = vsub.f32 %v1126, %v1136
    %v1139 = vmul.f32 %v1137, 1.442695
    %v1140 = vpow.pop %v1139
    %v1141 = vmul.f32 %v1138, 1.442695
    %v1142 = vpow.pop %v1141
    %v1143 = vsel %vm334, %v1140, 0.0
    %1144 = vadd.xlane.f32.xlu0 %v1143
    %v1145 = vpop.xlane.xlu0 %1144
    %v1146 = vsel %vm334, %v1142, 0.0
    %1147 = vadd.xlane.f32.xlu0 %v1146
    %v1148 = vpop.xlane.xlu0 %1147
    %v1149 = vrcp.pop %v1145
    %v1150 = vrcp.pop %v1148
    %v1151 = vmul.f32 %v1140, %v1149
    %v1152 = vmul.f32 %v1142, %v1150
    %v1153 = vpack.c.bf16 %v1151, %v1151
    %v1154 = vpack.c.bf16 %v1152, %v1152
    %1155 = vrot.lane.b32.xlu0 %v332, 104
    %v1156 = vpop.permute.xlu0 %1155
    %v1158 = vsel %vm334, %v1153, 0
    %v1161 = vsel %vm454, %v1156, 0
    %1163 = vmatprep.subr.bf16.mxu0 0
    %1164 = vmatpush1.bf16.msra.mxu0 0
    %1165 = vmatprep.subr.bf16.mxu0 0
    %1166 = vmatpush1.bf16.msra.mxu0 0
    %1167 = vmatprep.subr.bf16.mxu0 0
    %1168 = vmatpush1.bf16.msra.mxu0 0
    %1169 = vmatprep.subr.bf16.mxu0 0
    %1170 = vmatpush1.bf16.msra.mxu0 0
    %1171 = vmatprep.subr.bf16.mxu0 0
    %1172 = vmatpush1.bf16.msra.mxu0 0
    %1173 = vmatprep.subr.bf16.mxu0 0
    %1174 = vmatpush1.bf16.msra.mxu0 0
    %1175 = vmatprep.subr.bf16.mxu0 0
    %1176 = vmatpush1.bf16.msra.mxu0 0
    %1177 = vmatprep.subr.bf16.mxu0 0
    %1178 = vmatpush1.bf16.msra.mxu0 %v1161
    %1179 = vmatprep.subr.bf16.mxu0 0
    %1180 = vmatpush2.bf16.msra.mxu0 0
    %1181 = vmatprep.subr.bf16.mxu0 0
    %1182 = vmatpush2.bf16.msra.mxu0 0
    %1183 = vmatprep.subr.bf16.mxu0 0
    %1184 = vmatpush2.bf16.msra.mxu0 0
    %1185 = vmatprep.subr.bf16.mxu0 0
    %1186 = vmatpush2.bf16.msra.mxu0 0
    %1187 = vmatprep.subr.bf16.mxu0 0
    %1188 = vmatpush2.bf16.msra.mxu0 0
    %1189 = vmatprep.subr.bf16.mxu0 0
    %1190 = vmatpush2.bf16.msra.mxu0 0
    %1191 = vmatprep.subr.bf16.mxu0 0
    %1192 = vmatpush2.bf16.msra.mxu0 0
    %1193 = vmatprep.subr.bf16.mxu0 0
    %1194 = vmatpush2.bf16.msra.mxu0 0
    %1195 = vmatprep.mubr.bf16.mxu0 0
    %1196 = vmatmul.mubr.bf16.gmra.mxu0 %v1158
    %v1197 = vpop.f32.mrf.mxu0
    %v1198 = vadd.f32 0.0, %v1197
    %v1199 = vpop.f32.mrf.mxu0
    %v1200 = vpop.f32.mrf.mxu0
    %v1201 = vpop.f32.mrf.mxu0
    %1202 = vdwg.mxu0
    %1203 = vrot.lane.b32.xlu0 %v333, 104
    %v1204 = vpop.permute.xlu0 %1203
    %v1206 = vsel %vm334, %v1154, 0
    %v1209 = vsel %vm454, %v1204, 0
    %1211 = vmatprep.subr.bf16.mxu0 0
    %1212 = vmatpush1.bf16.msra.mxu0 0
    %1213 = vmatprep.subr.bf16.mxu0 0
    %1214 = vmatpush1.bf16.msra.mxu0 0
    %1215 = vmatprep.subr.bf16.mxu0 0
    %1216 = vmatpush1.bf16.msra.mxu0 0
    %1217 = vmatprep.subr.bf16.mxu0 0
    %1218 = vmatpush1.bf16.msra.mxu0 0
    %1219 = vmatprep.subr.bf16.mxu0 0
    %1220 = vmatpush1.bf16.msra.mxu0 0
    %1221 = vmatprep.subr.bf16.mxu0 0
    %1222 = vmatpush1.bf16.msra.mxu0 0
    %1223 = vmatprep.subr.bf16.mxu0 0
    %1224 = vmatpush1.bf16.msra.mxu0 0
    %1225 = vmatprep.subr.bf16.mxu0 0
    %1226 = vmatpush1.bf16.msra.mxu0 %v1209
    %1227 = vmatprep.subr.bf16.mxu0 0
    %1228 = vmatpush2.bf16.msra.mxu0 0
    %1229 = vmatprep.subr.bf16.mxu0 0
    %1230 = vmatpush2.bf16.msra.mxu0 0
    %1231 = vmatprep.subr.bf16.mxu0 0
    %1232 = vmatpush2.bf16.msra.mxu0 0
    %1233 = vmatprep.subr.bf16.mxu0 0
    %1234 = vmatpush2.bf16.msra.mxu0 0
    %1235 = vmatprep.subr.bf16.mxu0 0
    %1236 = vmatpush2.bf16.msra.mxu0 0
    %1237 = vmatprep.subr.bf16.mxu0 0
    %1238 = vmatpush2.bf16.msra.mxu0 0
    %1239 = vmatprep.subr.bf16.mxu0 0
    %1240 = vmatpush2.bf16.msra.mxu0 0
    %1241 = vmatprep.subr.bf16.mxu0 0
    %1242 = vmatpush2.bf16.msra.mxu0 0
    %1243 = vmatprep.mubr.bf16.mxu0 0
    %1244 = vmatmul.mubr.bf16.gmra.mxu0 %v1206
    %v1245 = vpop.f32.mrf.mxu0
    %v1246 = vadd.f32 0.0, %v1245
    %v1247 = vpop.f32.mrf.mxu0
    %v1248 = vpop.f32.mrf.mxu0
    %v1249 = vpop.f32.mrf.mxu0
    %1250 = vdwg.mxu0
    %v1251 = vpack.c.bf16 %v1246, %v1198
    %v1253 = vunpack.c.l.b16 %v1251
    %v1254 = vunpack.c.h.b16 %v1251
    %v1255 = vpack.c.b16 %v1253, %v1253
    %v1256 = vpack.c.b16 %v1254, %v1254
    %1257 = vrot.lane.b32.xlu0 %v1255, 24
    %v1258 = vpop.permute.xlu0 %1257
    %1259 = vrot.lane.b32.xlu0 %v1256, 24
    %v1260 = vpop.permute.xlu0 %1259
    %vm1263 = vcmask 257216
    %1264 = vst.msk [vmem:[#allocation2] sm:$0xf] %vm1263, %v1258
    %1265 = vst.msk [vmem:[#allocation2 + $0x4] sm:$0xf] %vm1263, %v1260
    %v1266 = vld [vmem:[#allocation2] sm:$0xf]
    %v1267 = vld [vmem:[#allocation2 + $0x4] sm:$0xf]
    %v1268 = vld [vmem:[#allocation14] sm:$0xf]
    %v1269 = vld [vmem:[#allocation14 + $0x4] sm:$0xf]
    %v1270 = vld [vmem:[#allocation14 + $0x8] sm:$0xf]
    %v1271 = vld [vmem:[#allocation14 + $0xc] sm:$0xf]
    %v1272 = vld [vmem:[%s7] sm:$0x1]
    %v1274 = vlaneseq
    %v1275 = vshrl.u32 %v1274, 7
    %v1276 = vsub.s32 0, %v1275
    %v1277 = vrot.slane %v1272, %v1276
    %v1281 = vunpack.c.l.b16 %v1266
    %v1282 = vunpack.c.l.b16 %v1267
    %v1283 = vpack.c.b16 %v1282, %v1281
    %v1288 = vunpack.c.l.b16 %v1268
    %v1289 = vunpack.c.l.b16 %v1269
    %v1290 = vunpack.c.l.b16 %v1270
    %v1291 = vunpack.c.l.b16 %v1271
    %v1292 = vpack.c.b16 %v1289, %v1288
    %v1293 = vpack.c.b16 %v1291, %v1290
    %v1297 = vsel %vm161, %v1283, 0
    %1299 = vmatprep.subr.bf16.mxu0 0
    %1300 = vmatpush1.bf16.msra.mxu0 0
    %1301 = vmatprep.subr.bf16.mxu0 0
    %1302 = vmatpush1.bf16.msra.mxu0 0
    %1303 = vmatprep.subr.bf16.mxu0 0
    %1304 = vmatpush1.bf16.msra.mxu0 0
    %1305 = vmatprep.subr.bf16.mxu0 0
    %1306 = vmatpush1.bf16.msra.mxu0 0
    %1307 = vmatprep.subr.bf16.mxu0 0
    %1308 = vmatpush1.bf16.msra.mxu0 0
    %1309 = vmatprep.subr.bf16.mxu0 0
    %1310 = vmatpush1.bf16.msra.mxu0 0
    %1311 = vmatprep.subr.bf16.mxu0 0
    %1312 = vmatpush1.bf16.msra.mxu0 %v1293
    %1313 = vmatprep.subr.bf16.mxu0 0
    %1314 = vmatpush1.bf16.msra.mxu0 %v1292
    %1315 = vmatprep.subr.bf16.mxu0 0
    %1316 = vmatpush2.bf16.msra.mxu0 0
    %1317 = vmatprep.subr.bf16.mxu0 0
    %1318 = vmatpush2.bf16.msra.mxu0 0
    %1319 = vmatprep.subr.bf16.mxu0 0
    %1320 = vmatpush2.bf16.msra.mxu0 0
    %1321 = vmatprep.subr.bf16.mxu0 0
    %1322 = vmatpush2.bf16.msra.mxu0 0
    %1323 = vmatprep.subr.bf16.mxu0 0
    %1324 = vmatpush2.bf16.msra.mxu0 0
    %1325 = vmatprep.subr.bf16.mxu0 0
    %1326 = vmatpush2.bf16.msra.mxu0 0
    %1327 = vmatprep.subr.bf16.mxu0 0
    %1328 = vmatpush2.bf16.msra.mxu0 0
    %1329 = vmatprep.subr.bf16.mxu0 0
    %1330 = vmatpush2.bf16.msra.mxu0 0
    %1331 = vmatprep.mubr.bf16.mxu0 0
    %1332 = vmatmul.mubr.bf16.gmra.mxu0 %v1297
    %v1333 = vpop.f32.mrf.mxu0
    %v1334 = vadd.f32 %v1277, %v1333
    %v1335 = vpop.f32.mrf.mxu0
    %v1336 = vpop.f32.mrf.mxu0
    %v1337 = vadd.f32 %v1277, %v1336
    %v1338 = vpop.f32.mrf.mxu0
    %1339 = vdwg.mxu0
    %v1340 = vpack.c.bf16 %v1334, %v1334
    %v1341 = vpack.c.bf16 %v1337, %v1337
    %1342 = vst [vmem:[#allocation15] sm:$0xf] %v1340
    %1343 = vst [vmem:[#allocation15 + $0x4] sm:$0xf] %v1341
    // Predicated region
    $region62: #{tpu_custom_call.1} parent=1 // pred_check
      _
    $region63: #{tpu_custom_call.1} parent=1 // pred_check_branch
      %1345 = sbr.rel (0) target = $region65
    $region64: #{tpu_custom_call.1} parent=1 // pred_region
      %s1347 = ssub.s32 128, 128
      %1348 = vsyncadd [#allocation5], %s1347
      %s1349 = sshll.u32 [#allocation15], 4
      %s1350 = int_to_ptr.vmem [resolvable:$true] %s1349
      %1355 = dma.vmem_to_hbm [thread:$0]  %s1350, 128, %s8, [#allocation5], 64, 64, 4
    $region65: #{tpu_custom_call.1} parent=1 // pred_fallthru
      _
    // Predicated region
    $region66: #{tpu_custom_call.1} parent=1 // pred_check
      _
    $region67: #{tpu_custom_call.1} parent=1 // pred_check_branch
      %1357 = sbr.rel (0) target = $region69
    $region68: #{tpu_custom_call.1} parent=1 // pred_region
      %1358 = dma.done [#allocation5], 128
    $region69: #{tpu_custom_call.1} parent=1 // pred_fallthru
      _
    %1359 = vsyncpa [#allocation4], 1
    %1360 = vsyncpa [#allocation7], 1
    %1361 = vsyncpa [#allocation10], 1
    %1362 = vsyncpa [#allocation13], 1
    %1363 = vsyncpa [#allocation5], 1

</llo_original>
